<compile_context>
chip_gen: v5e
topology: v5e:2x2
jax: 0.10.0
libtpu: 0.0.40
codegen_flags: <defaults>
</compile_context>

<pallas_src>
import functools

import jax
import jax.numpy as jnp
from jax import lax
from jax.experimental import pallas as pl
from jax.experimental.pallas import tpu as pltpu


# ----------------------------------------------------------------------------
# small helpers
# ----------------------------------------------------------------------------
def _largest_divisor_leq(n, cap):
    cap = max(1, min(n, cap))
    for t in range(cap, 0, -1):
        if n % t == 0:
            return t
    return 1


# ----------------------------------------------------------------------------
# Kernel 1: fused 4x4 / stride-2 / pad-1 conv (space-to-depth form)
#           + per-block BatchNorm partial statistics epilogue
# ----------------------------------------------------------------------------
def _down_conv_kernel(xb_ref, xh_ref, w_ref, y_ref, st_ref, band_ref, *, tr, wo):
    # xb_ref : (1, TR, Wp, C4)   main band of the space-to-depth input
    # xh_ref : (1, 1,  Wp, C4)   halo row (row TR of this band)
    # w_ref  : (4, C4, Cout)     tap matrices, tap = dr*2 + dc
    # y_ref  : (1, TR, Wo, Cout) conv output band
    # st_ref : (1, 1, 2, Cout)   [partial sum ; partial sum of squares]
    # band_ref: VMEM scratch (TR+1, Wp, C4)

    # Assemble the (TR+1)-row band in VMEM (band + 1-row halo).
    band_ref[0:tr] = xb_ref[0]
    band_ref[tr:tr + 1] = xh_ref[0]

    c4 = band_ref.shape[-1]
    cout = w_ref.shape[-1]

    # 2x2 stride-1 conv over the space-to-depth tensor == original 4x4/s2/p1
    # conv; 4 shifted matmuls accumulated on the MXU, no HBM im2col.
    acc = jnp.zeros((tr * wo, cout), jnp.float32)
    for dr in (0, 1):
        for dc in (0, 1):
            a = band_ref[dr:dr + tr, dc:dc + wo, :].reshape(tr * wo, c4)
            acc = acc + jnp.dot(a, w_ref[dr * 2 + dc],
                                preferred_element_type=jnp.float32)

    y_ref[...] = acc.reshape(1, tr, wo, cout).astype(y_ref.dtype)

    # BatchNorm statistics epilogue (per-block partial sums).
    st_ref[:, :, 0:1, :] = jnp.sum(acc, axis=0, keepdims=True).reshape(1, 1, 1, cout)
    st_ref[:, :, 1:2, :] = jnp.sum(acc * acc, axis=0, keepdims=True).reshape(1, 1, 1, cout)


def down_conv_s2(x_nchw, w_taps, *, band_bytes=1 << 20):
    """Conv2d(in, out, kernel=4, stride=2, padding=1, bias=False), NCHW input.

    Returns (y_nhwc, chan_sum, chan_sumsq)."""
    B, Cin, H, W = x_nchw.shape
    assert H % 2 == 0 and W % 2 == 0, "DownBlock expects even spatial dims"
    Ho, Wo = H // 2, W // 2
    Hp, Wp = Ho + 1, Wo + 1
    C4 = 4 * Cin
    Cout = w_taps.shape[-1]

    # pad=1 + space-to-depth (block 2): one layout pass, ~input-sized, instead
    # of the 4x (16*Cin) im2col blow-up of the naive formulation.
    xp = jnp.pad(x_nchw, ((0, 0), (0, 0), (1, 1), (1, 1)))
    xs = xp.reshape(B, Cin, Hp, 2, Wp, 2)
    xs = jnp.transpose(xs, (0, 2, 4, 3, 5, 1)).reshape(B, Hp, Wp, C4)

    # Row-band tile: as many output rows as fit the VMEM budget (large M).
    tr = _largest_divisor_leq(Ho, max(1, band_bytes // (Wp * C4 * 4)))
    nj = Ho // tr

    kernel = functools.partial(_down_conv_kernel, tr=tr, wo=Wo)
    y, stats = pl.pallas_call(
        kernel,
        out_shape=(
            jax.ShapeDtypeStruct((B, Ho, Wo, Cout), jnp.float32),
            jax.ShapeDtypeStruct((B, nj, 2, Cout), jnp.float32),
        ),
        grid_spec=pltpu.PrefetchScalarGridSpec(
            num_scalar_prefetch=0,
            grid=(B, nj),
            in_specs=[
                pl.BlockSpec((1, tr, Wp, C4), lambda b, j: (b, j, 0, 0)),
                # 1-row halo: block size 1 along rows -> block index == row index.
                pl.BlockSpec((1, 1, Wp, C4), lambda b, j: (b, (j + 1) * tr, 0, 0)),
                pl.BlockSpec((4, C4, Cout), lambda b, j: (0, 0, 0)),
            ],
            out_specs=(
                pl.BlockSpec((1, tr, Wo, Cout), lambda b, j: (b, j, 0, 0)),
                pl.BlockSpec((1, 1, 2, Cout), lambda b, j: (b, j, 0, 0)),
            ),
            scratch_shapes=[pltpu.VMEM((tr + 1, Wp, C4), jnp.float32)],
        ),
        compiler_params=pltpu.CompilerParams(
            dimension_semantics=("parallel", "parallel")),
    )(xs, xs, w_taps)

    chan_sum = jnp.sum(stats[:, :, 0, :], axis=(0, 1))
    chan_sq = jnp.sum(stats[:, :, 1, :], axis=(0, 1))
    return y, chan_sum, chan_sq


# ----------------------------------------------------------------------------
# Kernel 2: fused BatchNorm affine + LeakyReLU(0.2), lane-dense layout
# ----------------------------------------------------------------------------
def _bn_lrelu_kernel(y_ref, s_ref, b_ref, o_ref, *, slope):
    z = y_ref[...] * s_ref[...] + b_ref[...]
    o_ref[...] = jnp.maximum(z, slope * z)      # LeakyReLU, slope in (0,1)


def bn_lrelu(y_nhwc, scale, shift, *, slope=0.2, tile_bytes=2 << 20):
    B, Ho, Wo, Cout = y_nhwc.shape
    rows, wc = B * Ho, Wo * Cout
    # Lane-dense view: lane dim = Wo*Cout (>= 128x denser than Cout alone).
    y2 = y_nhwc.reshape(rows, wc)
    s_row = jnp.tile(scale, Wo).reshape(1, wc)
    b_row = jnp.tile(shift, Wo).reshape(1, wc)

    cap = max(1, tile_bytes // (wc * 4))
    if rows <= cap:
        tm, rows_p = rows, rows
    else:
        tm = None
        for t in range(min(cap, rows), 7, -1):
            if rows % t == 0 and t % 8 == 0:
                tm = t
                break
        if tm is None:                           # no clean divisor: pad rows
            tm = max(8, cap - cap % 8)
        rows_p = -(-rows // tm) * tm
    if rows_p != rows:
        y2 = jnp.pad(y2, ((0, rows_p - rows), (0, 0)))

    out = pl.pallas_call(
        functools.partial(_bn_lrelu_kernel, slope=slope),
        out_shape=jax.ShapeDtypeStruct((rows_p, wc), jnp.float32),
        grid_spec=pltpu.PrefetchScalarGridSpec(
            num_scalar_prefetch=0,
            grid=(rows_p // tm,),
            in_specs=[
                pl.BlockSpec((tm, wc), lambda i: (i, 0)),
                pl.BlockSpec((1, wc), lambda i: (0, 0)),
                pl.BlockSpec((1, wc), lambda i: (0, 0)),
            ],
            out_specs=pl.BlockSpec((tm, wc), lambda i: (i, 0)),
        ),
        compiler_params=pltpu.CompilerParams(dimension_semantics=("parallel",)),
    )(y2, s_row, b_row)
    if rows_p != rows:
        out = out[:rows]
    return out.reshape(B, Ho, Wo, Cout)


# ----------------------------------------------------------------------------
# DownBlock forward
# ----------------------------------------------------------------------------
def downblock_forward(params, feat_nchw, eps=1e-5, slope=0.2):
    """spectral_norm Conv2d(4,2,1,bias=False) -> BatchNorm2d -> LeakyReLU(0.2)."""
    y, s, sq = down_conv_s2(feat_nchw, params["w_taps"])
    B, Ho, Wo, Cout = y.shape
    n = B * Ho * Wo
    mean = s / n
    var = sq / n - mean * mean                    # biased var (train-mode BN)
    inv = params["gamma"] * lax.rsqrt(var + eps)
    shift = params["beta"] - mean * inv
    out = bn_lrelu(y, inv, shift, slope=slope)
    return jnp.transpose(out, (0, 3, 1, 2))       # NHWC -> NCHW (torch layout)


# ----------------------------------------------------------------------------
# deterministic synthetic parameters
# ----------------------------------------------------------------------------
def spectral_normalize(w, dim=0, iters=10):
    """torch spectral_norm semantics: divide weight by largest singular value."""
    wm = jnp.moveaxis(w, dim, 0).reshape(w.shape[dim], -1)
    v = jnp.ones((wm.shape[1],), w.dtype) / jnp.sqrt(jnp.float32(wm.shape[1]))
    u = jnp.zeros((wm.shape[0],), w.dtype)
    for _ in range(iters):
        u = wm @ v
        u = u / (jnp.linalg.norm(u) + 1e-12)
        v = wm.T @ u
        v = v / (jnp.linalg.norm(v) + 1e-12)
    sigma = u @ (wm @ v)
    return w / sigma


def pack_conv4_taps(w_oihw):
    """(Cout, Cin, 4, 4) -> (4, 4*Cin, Cout) tap matrices for the space-to-depth
    form: tap = dr*2+dc, row = (dy*2+dx)*Cin + cin, with kh=2dr+dy, kw=2dc+dx."""
    cout, cin = w_oihw.shape[:2]
    w = jnp.transpose(w_oihw, (2, 3, 1, 0))          # (kh, kw, cin, cout)
    w = w.reshape(2, 2, 2, 2, cin, cout)             # (dr, dy, dc, dx, cin, cout)
    w = jnp.transpose(w, (0, 2, 1, 3, 4, 5))         # (dr, dc, dy, dx, cin, cout)
    return w.reshape(4, 4 * cin, cout)


def init_params(key, in_planes, out_planes):
    w = 0.05 * jax.random.normal(key, (out_planes, in_planes, 4, 4), jnp.float32)
    w = spectral_normalize(w, dim=0)
    return {
        "w_oihw": w,
        "w_taps": pack_conv4_taps(w),
        "gamma": jnp.ones((out_planes,), jnp.float32),   # fresh BatchNorm2d
        "beta": jnp.zeros((out_planes,), jnp.float32),
    }


# ----------------------------------------------------------------------------
# pure-JAX reference (torch-equivalent) for a correctness sanity check
# ----------------------------------------------------------------------------
def reference_forward(params, feat_nchw, eps=1e-5, slope=0.2):
    y = lax.conv_general_dilated(
        feat_nchw, params["w_oihw"], window_strides=(2, 2),
        padding=((1, 1), (1, 1)), dimension_numbers=("NCHW", "OIHW", "NCHW"))
    mean = jnp.mean(y, axis=(0, 2, 3), keepdims=True)
    var = jnp.mean((y - mean) ** 2, axis=(0, 2, 3), keepdims=True)
    z = (y - mean) / jnp.sqrt(var + eps)
    z = z * params["gamma"].reshape(1, -1, 1, 1) + params["beta"].reshape(1, -1, 1, 1)
    return jnp.where(z > 0, z, slope * z)


if __name__ == "__main__":
    key = jax.random.PRNGKey(0)
    pkey, xkey = jax.random.split(key)
    in_planes, out_planes = 16, 32
    params = init_params(pkey, in_planes, out_planes)
    feat = jax.random.normal(xkey, (2, in_planes, 32, 32), jnp.float32)

    out = jax.jit(downblock_forward)(params, feat)
    jax.block_until_ready(out)

    assert out.shape == (2, out_planes, 16, 16)
    assert bool(jnp.all(jnp.isfinite(out)))

    ref = reference_forward(params, feat)
    err = float(jnp.max(jnp.abs(out - ref)))
    assert err < 1e-2, f"max abs err vs reference = {err}"
    print("KERNEL_OK")
</pallas_src>

<mosaic_0001>
module attributes {stable_mosaic.version = 11 : i64} {
  func.func @_down_conv_kernel(%arg0: i32, %arg1: i32, %arg2: memref<1x16x17x64xf32, #tpu.memory_space<vmem>>, %arg3: memref<1x1x17x64xf32, #tpu.memory_space<vmem>>, %arg4: memref<4x64x32xf32, #tpu.memory_space<vmem>>, %arg5: memref<1x16x16x32xf32, #tpu.memory_space<vmem>>, %arg6: memref<1x1x2x32xf32, #tpu.memory_space<vmem>>, %arg7: memref<17x17x64xf32, #tpu.memory_space<vmem>>) attributes {dimension_semantics = [#tpu.dimension_semantics<parallel>, #tpu.dimension_semantics<parallel>], iteration_bounds = array<i64: 2, 1>, scalar_prefetch = 0 : i64, scratch_operands = 1 : i64, tpu.core_type = #tpu.core_type<tc>, window_params = [{transform_indices = @transform_0, window_bounds = array<i64: 1, 16, 17, 64>}, {transform_indices = @transform_1, window_bounds = array<i64: 1, 1, 17, 64>}, {pipeline_mode = #tpu.pipeline_mode<synchronous>, transform_indices = @transform_2, window_bounds = array<i64: 4, 64, 32>}, {transform_indices = @transform_3, window_bounds = array<i64: 1, 16, 16, 32>}, {transform_indices = @transform_4, window_bounds = array<i64: 1, 1, 2, 32>}]} {
    %c0 = arith.constant 0 : index
    %c0_0 = arith.constant 0 : index
    %c0_1 = arith.constant 0 : index
    %c0_2 = arith.constant 0 : index
    %0 = vector.load %arg2[%c0, %c0_0, %c0_1, %c0_2] : memref<1x16x17x64xf32, #tpu.memory_space<vmem>>, vector<1x16x17x64xf32>
    %1 = vector.shape_cast %0 : vector<1x16x17x64xf32> to vector<16x17x64xf32>
    %c0_3 = arith.constant 0 : index
    %c0_4 = arith.constant 0 : index
    %c0_5 = arith.constant 0 : index
    %2 = vector.load %arg7[%c0_3, %c0_4, %c0_5] : memref<17x17x64xf32, #tpu.memory_space<vmem>>, vector<16x17x64xf32>
    tpu.vector_store %arg7[%c0_3, %c0_4, %c0_5], %1 {strides = array<i32>} : memref<17x17x64xf32, #tpu.memory_space<vmem>>, vector<16x17x64xf32>,
    %c0_6 = arith.constant 0 : index
    %c0_7 = arith.constant 0 : index
    %c0_8 = arith.constant 0 : index
    %c0_9 = arith.constant 0 : index
    %3 = vector.load %arg3[%c0_6, %c0_7, %c0_8, %c0_9] : memref<1x1x17x64xf32, #tpu.memory_space<vmem>>, vector<1x1x17x64xf32>
    %4 = vector.shape_cast %3 : vector<1x1x17x64xf32> to vector<1x17x64xf32>
    %c16 = arith.constant 16 : index
    %c0_10 = arith.constant 0 : index
    %c0_11 = arith.constant 0 : index
    %5 = vector.load %arg7[%c16, %c0_10, %c0_11] : memref<17x17x64xf32, #tpu.memory_space<vmem>>, vector<1x17x64xf32>
    tpu.vector_store %arg7[%c16, %c0_10, %c0_11], %4 {strides = array<i32>} : memref<17x17x64xf32, #tpu.memory_space<vmem>>, vector<1x17x64xf32>,
    %cst = arith.constant 0.000000e+00 : f32
    %6 = vector.broadcast %cst : f32 to vector<256x32xf32>
    %c0_12 = arith.constant 0 : index
    %c0_13 = arith.constant 0 : index
    %c0_14 = arith.constant 0 : index
    %7 = vector.load %arg7[%c0_12, %c0_13, %c0_14] : memref<17x17x64xf32, #tpu.memory_space<vmem>>, vector<16x16x64xf32>
    %8 = vector.shape_cast %7 : vector<16x16x64xf32> to vector<256x64xf32>
    %c0_15 = arith.constant 0 : index
    %c0_16 = arith.constant 0 : index
    %c0_17 = arith.constant 0 : index
    %9 = vector.load %arg4[%c0_15, %c0_16, %c0_17] : memref<4x64x32xf32, #tpu.memory_space<vmem>>, vector<1x64x32xf32>
    %10 = vector.shape_cast %9 : vector<1x64x32xf32> to vector<64x32xf32>
    %cst_18 = arith.constant dense<0.000000e+00> : vector<256x32xf32>
    %11 = tpu.matmul %8, %10, %cst_18 {dimension_numbers = #tpu.dot_dimension_numbers<[1], [0], [0], [1], [0, 0, 1, 1], [], []>} : vector<256x64xf32>, vector<64x32xf32>, vector<256x32xf32> -> vector<256x32xf32>
    %12 = arith.addf %6, %11 : vector<256x32xf32>
    %c0_19 = arith.constant 0 : index
    %c1 = arith.constant 1 : index
    %c0_20 = arith.constant 0 : index
    %13 = vector.load %arg7[%c0_19, %c1, %c0_20] : memref<17x17x64xf32, #tpu.memory_space<vmem>>, vector<16x16x64xf32>
    %14 = vector.shape_cast %13 : vector<16x16x64xf32> to vector<256x64xf32>
    %c1_21 = arith.constant 1 : index
    %c0_22 = arith.constant 0 : index
    %c0_23 = arith.constant 0 : index
    %15 = vector.load %arg4[%c1_21, %c0_22, %c0_23] : memref<4x64x32xf32, #tpu.memory_space<vmem>>, vector<1x64x32xf32>
    %16 = vector.shape_cast %15 : vector<1x64x32xf32> to vector<64x32xf32>
    %cst_24 = arith.constant dense<0.000000e+00> : vector<256x32xf32>
    %17 = tpu.matmul %14, %16, %cst_24 {dimension_numbers = #tpu.dot_dimension_numbers<[1], [0], [0], [1], [0, 0, 1, 1], [], []>} : vector<256x64xf32>, vector<64x32xf32>, vector<256x32xf32> -> vector<256x32xf32>
    %18 = arith.addf %12, %17 : vector<256x32xf32>
    %c1_25 = arith.constant 1 : index
    %c0_26 = arith.constant 0 : index
    %c0_27 = arith.constant 0 : index
    %19 = vector.load %arg7[%c1_25, %c0_26, %c0_27] : memref<17x17x64xf32, #tpu.memory_space<vmem>>, vector<16x16x64xf32>
    %20 = vector.shape_cast %19 : vector<16x16x64xf32> to vector<256x64xf32>
    %c2 = arith.constant 2 : index
    %c0_28 = arith.constant 0 : index
    %c0_29 = arith.constant 0 : index
    %21 = vector.load %arg4[%c2, %c0_28, %c0_29] : memref<4x64x32xf32, #tpu.memory_space<vmem>>, vector<1x64x32xf32>
    %22 = vector.shape_cast %21 : vector<1x64x32xf32> to vector<64x32xf32>
    %cst_30 = arith.constant dense<0.000000e+00> : vector<256x32xf32>
    %23 = tpu.matmul %20, %22, %cst_30 {dimension_numbers = #tpu.dot_dimension_numbers<[1], [0], [0], [1], [0, 0, 1, 1], [], []>} : vector<256x64xf32>, vector<64x32xf32>, vector<256x32xf32> -> vector<256x32xf32>
    %24 = arith.addf %18, %23 : vector<256x32xf32>
    %c1_31 = arith.constant 1 : index
    %c1_32 = arith.constant 1 : index
    %c0_33 = arith.constant 0 : index
    %25 = vector.load %arg7[%c1_31, %c1_32, %c0_33] : memref<17x17x64xf32, #tpu.memory_space<vmem>>, vector<16x16x64xf32>
    %26 = vector.shape_cast %25 : vector<16x16x64xf32> to vector<256x64xf32>
    %c3 = arith.constant 3 : index
    %c0_34 = arith.constant 0 : index
    %c0_35 = arith.constant 0 : index
    %27 = vector.load %arg4[%c3, %c0_34, %c0_35] : memref<4x64x32xf32, #tpu.memory_space<vmem>>, vector<1x64x32xf32>
    %28 = vector.shape_cast %27 : vector<1x64x32xf32> to vector<64x32xf32>
    %cst_36 = arith.constant dense<0.000000e+00> : vector<256x32xf32>
    %29 = tpu.matmul %26, %28, %cst_36 {dimension_numbers = #tpu.dot_dimension_numbers<[1], [0], [0], [1], [0, 0, 1, 1], [], []>} : vector<256x64xf32>, vector<64x32xf32>, vector<256x32xf32> -> vector<256x32xf32>
    %30 = arith.addf %24, %29 : vector<256x32xf32>
    %31 = vector.shape_cast %30 : vector<256x32xf32> to vector<1x16x16x32xf32>
    %c0_37 = arith.constant 0 : index
    %c0_38 = arith.constant 0 : index
    %c0_39 = arith.constant 0 : index
    %c0_40 = arith.constant 0 : index
    %32 = vector.load %arg5[%c0_37, %c0_38, %c0_39, %c0_40] : memref<1x16x16x32xf32, #tpu.memory_space<vmem>>, vector<1x16x16x32xf32>
    tpu.vector_store %arg5[%c0_37, %c0_38, %c0_39, %c0_40], %31 {strides = array<i32>} : memref<1x16x16x32xf32, #tpu.memory_space<vmem>>, vector<1x16x16x32xf32>,
    %cst_41 = arith.constant dense<0.000000e+00> : vector<32xf32>
    %33 = vector.multi_reduction <add>, %30, %cst_41 [0] : vector<256x32xf32> to vector<32xf32>
    %34 = vector.shape_cast %33 : vector<32xf32> to vector<1x32xf32>
    %35 = vector.shape_cast %34 : vector<1x32xf32> to vector<1x1x1x32xf32>
    %c0_42 = arith.constant 0 : index
    %c0_43 = arith.constant 0 : index
    %c0_44 = arith.constant 0 : index
    %c0_45 = arith.constant 0 : index
    %36 = vector.load %arg6[%c0_42, %c0_43, %c0_44, %c0_45] : memref<1x1x2x32xf32, #tpu.memory_space<vmem>>, vector<1x1x1x32xf32>
    tpu.vector_store %arg6[%c0_42, %c0_43, %c0_44, %c0_45], %35 {strides = array<i32>} : memref<1x1x2x32xf32, #tpu.memory_space<vmem>>, vector<1x1x1x32xf32>,
    %37 = arith.mulf %30, %30 : vector<256x32xf32>
    %cst_46 = arith.constant dense<0.000000e+00> : vector<32xf32>
    %38 = vector.multi_reduction <add>, %37, %cst_46 [0] : vector<256x32xf32> to vector<32xf32>
    %39 = vector.shape_cast %38 : vector<32xf32> to vector<1x32xf32>
    %40 = vector.shape_cast %39 : vector<1x32xf32> to vector<1x1x1x32xf32>
    %c0_47 = arith.constant 0 : index
    %c0_48 = arith.constant 0 : index
    %c1_49 = arith.constant 1 : index
    %c0_50 = arith.constant 0 : index
    %41 = vector.load %arg6[%c0_47, %c0_48, %c1_49, %c0_50] : memref<1x1x2x32xf32, #tpu.memory_space<vmem>>, vector<1x1x1x32xf32>
    tpu.vector_store %arg6[%c0_47, %c0_48, %c1_49, %c0_50], %40 {strides = array<i32>} : memref<1x1x2x32xf32, #tpu.memory_space<vmem>>, vector<1x1x1x32xf32>,
    return
  }
  func.func @transform_0(%arg0: i32, %arg1: i32) -> (i32, i32, i32, i32) {
    %c0_i32 = arith.constant 0 : i32
    %c0_i32_0 = arith.constant 0 : i32
    %c0_i32_1 = arith.constant 0 : i32
    return %arg0, %arg1, %c0_i32, %c0_i32_0 : i32, i32, i32, i32
  }
  func.func @transform_1(%arg0: i32, %arg1: i32) -> (i32, i32, i32, i32) {
    %c1_i32 = arith.constant 1 : i32
    %0 = arith.addi %arg1, %c1_i32 : i32
    %c16_i32 = arith.constant 16 : i32
    %1 = arith.muli %0, %c16_i32 : i32
    %c0_i32 = arith.constant 0 : i32
    %c0_i32_0 = arith.constant 0 : i32
    %c0_i32_1 = arith.constant 0 : i32
    return %arg0, %1, %c0_i32, %c0_i32_0 : i32, i32, i32, i32
  }
  func.func @transform_2(%arg0: i32, %arg1: i32) -> (i32, i32, i32) {
    %c0_i32 = arith.constant 0 : i32
    %c0_i32_0 = arith.constant 0 : i32
    %c0_i32_1 = arith.constant 0 : i32
    %c0_i32_2 = arith.constant 0 : i32
    return %c0_i32, %c0_i32_0, %c0_i32_1 : i32, i32, i32
  }
  func.func @transform_3(%arg0: i32, %arg1: i32) -> (i32, i32, i32, i32) {
    %c0_i32 = arith.constant 0 : i32
    %c0_i32_0 = arith.constant 0 : i32
    %c0_i32_1 = arith.constant 0 : i32
    return %arg0, %arg1, %c0_i32, %c0_i32_0 : i32, i32, i32, i32
  }
  func.func @transform_4(%arg0: i32, %arg1: i32) -> (i32, i32, i32, i32) {
    %c0_i32 = arith.constant 0 : i32
    %c0_i32_0 = arith.constant 0 : i32
    %c0_i32_1 = arith.constant 0 : i32
    return %arg0, %arg1, %c0_i32, %c0_i32_0 : i32, i32, i32, i32
  }
}

module attributes {stable_mosaic.version = 11 : i64} {
  func.func @_bn_lrelu_kernel(%arg0: i32, %arg1: memref<32x512xf32, #tpu.memory_space<vmem>>, %arg2: memref<1x512xf32, #tpu.memory_space<vmem>>, %arg3: memref<1x512xf32, #tpu.memory_space<vmem>>, %arg4: memref<32x512xf32, #tpu.memory_space<vmem>>) attributes {dimension_semantics = [#tpu.dimension_semantics<parallel>], iteration_bounds = array<i64: 1>, scalar_prefetch = 0 : i64, scratch_operands = 0 : i64, tpu.core_type = #tpu.core_type<tc>, window_params = [{transform_indices = @transform_0, window_bounds = array<i64: 32, 512>}, {pipeline_mode = #tpu.pipeline_mode<synchronous>, transform_indices = @transform_1, window_bounds = array<i64: 1, 512>}, {pipeline_mode = #tpu.pipeline_mode<synchronous>, transform_indices = @transform_2, window_bounds = array<i64: 1, 512>}, {transform_indices = @transform_3, window_bounds = array<i64: 32, 512>}]} {
    %c0 = arith.constant 0 : index
    %c0_0 = arith.constant 0 : index
    %0 = vector.load %arg1[%c0, %c0_0] : memref<32x512xf32, #tpu.memory_space<vmem>>, vector<32x512xf32>
    %c0_1 = arith.constant 0 : index
    %c0_2 = arith.constant 0 : index
    %1 = vector.load %arg2[%c0_1, %c0_2] : memref<1x512xf32, #tpu.memory_space<vmem>>, vector<1x512xf32>
    %2 = vector.broadcast %1 : vector<1x512xf32> to vector<32x512xf32>
    %3 = arith.mulf %0, %2 : vector<32x512xf32>
    %c0_3 = arith.constant 0 : index
    %c0_4 = arith.constant 0 : index
    %4 = vector.load %arg3[%c0_3, %c0_4] : memref<1x512xf32, #tpu.memory_space<vmem>>, vector<1x512xf32>
    %5 = vector.broadcast %4 : vector<1x512xf32> to vector<32x512xf32>
    %6 = arith.addf %3, %5 : vector<32x512xf32>
    %cst = arith.constant 2.000000e-01 : f32
    %7 = vector.broadcast %cst : f32 to vector<32x512xf32>
    %8 = arith.mulf %7, %6 : vector<32x512xf32>
    %9 = arith.maximumf %6, %8 : vector<32x512xf32>
    %c0_5 = arith.constant 0 : index
    %c0_6 = arith.constant 0 : index
    %10 = vector.load %arg4[%c0_5, %c0_6] : memref<32x512xf32, #tpu.memory_space<vmem>>, vector<32x512xf32>
    tpu.vector_store %arg4[%c0_5, %c0_6], %9 {strides = array<i32>} : memref<32x512xf32, #tpu.memory_space<vmem>>, vector<32x512xf32>,
    return
  }
  func.func @transform_0(%arg0: i32) -> (i32, i32) {
    %c0_i32 = arith.constant 0 : i32
    %c0_i32_0 = arith.constant 0 : i32
    return %arg0, %c0_i32 : i32, i32
  }
  func.func @transform_1(%arg0: i32) -> (i32, i32) {
    %c0_i32 = arith.constant 0 : i32
    %c0_i32_0 = arith.constant 0 : i32
    %c0_i32_1 = arith.constant 0 : i32
    return %c0_i32, %c0_i32_0 : i32, i32
  }
  func.func @transform_2(%arg0: i32) -> (i32, i32) {
    %c0_i32 = arith.constant 0 : i32
    %c0_i32_0 = arith.constant 0 : i32
    %c0_i32_1 = arith.constant 0 : i32
    return %c0_i32, %c0_i32_0 : i32, i32
  }
  func.func @transform_3(%arg0: i32) -> (i32, i32) {
    %c0_i32 = arith.constant 0 : i32
    %c0_i32_0 = arith.constant 0 : i32
    return %arg0, %c0_i32 : i32, i32
  }
}

</mosaic_0001>

<llo_original>
// kernel: tile.13
$region0: #{tile.13}
  #allocation0 [shape = 's32[1]{0}', space=sflag, size = 0x4, scoped, tag = 'scoped memory for tile.13']
  %s0 = inlined_call_operand.vmem [shape: f32[32], index: 0, kind: input, shape index: {}]
  %s1 = inlined_call_operand.vmem [shape: f32[16,32], index: 1, kind: output, shape index: {}]
  // Predicated region
  $region2: #{tile.13} parent=0 // pred_check
    _
  $region3: #{tile.13} parent=0 // pred_check_branch
    %3 = sbr.rel (0) target = $region5
  $region4: #{tile.13} parent=0 // pred_region
    _
  $region5: #{tile.13} parent=0 // pred_fallthru
    _
  %v4 = vld [vmem:[%s0] ss:$0 sm:$0xff]
  %5 = vst [vmem:[%s1] sm:$0xff] %v4
  %s6 = scalar_lea.vmem %s1, 8
  %7 = vst [vmem:[%s6] sm:$0xff] %v4

// kernel: tile.14
$region0: #{tile.14}
  %s0 = inlined_call_operand.vmem [shape: f32[16,32], index: 0, kind: input, shape index: {}]
  %s1 = inlined_call_operand.vmem [shape: f32[1,512], index: 1, kind: output, shape index: {}]
  $region1: #{tile.14} parent=0
    #allocation0 [shape = 'u8[16384]{0}', space=vmem, size = 0x4000, scoped, tag = 'scoped mem for output reshape']
    %v2 = vld [vmem:[%s0] ss:$4 sm:$0xf]
    %vm3 = vcmask 261120
    %4 = vst.msk [vmem:[#allocation0] ss:$8 sm:$0xf] %vm3, %v2
    %s5 = scalar_lea.vmem %s0, 3
    %v6 = vld [vmem:[%s5] ss:$4 sm:$0xf]
    %7 = vrot.lane.b32.xlu0 %v6, 96
    %v8 = vpop.permute.xlu0 %7
    %vm9 = vcmask 1048320
    %10 = vst.msk [vmem:[#allocation0] ss:$8 sm:$0xf] %vm9, %v8
    %s11 = scalar_lea.vmem %s0, 2
    %v12 = vld [vmem:[%s11] ss:$4 sm:$0xf]
    %13 = vrot.lane.b32.xlu0 %v12, 64
    %v14 = vpop.permute.xlu0 %13
    %vm15 = vcmask 785920
    %16 = vst.msk [vmem:[#allocation0] ss:$8 sm:$0xf] %vm15, %v14
    %s17 = scalar_lea.vmem %s0, 1
    %v18 = vld [vmem:[%s17] ss:$4 sm:$0xf]
    %19 = vrot.lane.b32.xlu0 %v18, 32
    %v20 = vpop.permute.xlu0 %19
    %vm21 = vcmask 523520
    %22 = vst.msk [vmem:[#allocation0] ss:$8 sm:$0xf] %vm21, %v20
    %s24 = ssub.s32 2, 1
    %v25 = vld [vmem:[#allocation0] sm:%s24]
    %s27 = ssub.s32 2, 1
    %28 = vst [vmem:[%s1] sm:%s27] %v25
    %s29 = scalar_lea.vmem [#allocation0], 8
    %v30 = vld [vmem:[%s29] sm:%s24]
    %s32 = ssub.s32 2, 1
    %s33 = scalar_lea.vmem %s1, 1
    %34 = vst [vmem:[%s33] sm:%s32] %v30
    %s35 = scalar_lea.vmem [#allocation0], 16
    %v36 = vld [vmem:[%s35] sm:%s24]
    %s38 = ssub.s32 2, 1
    %s39 = scalar_lea.vmem %s1, 2
    %40 = vst [vmem:[%s39] sm:%s38] %v36
    %s41 = scalar_lea.vmem [#allocation0], 24
    %v42 = vld [vmem:[%s41] sm:%s24]
    %s44 = ssub.s32 2, 1
    %s45 = scalar_lea.vmem %s1, 3
    %46 = vst [vmem:[%s45] sm:%s44] %v42

// kernel: downblock_forward.3
$region0: #{downblock_forward.3}
  #allocation0 [shape = 'u32[]', space=smem, size = 0x4, offset = 0x4, fixed_abs, tag = 'smem constant byte address 0x4 - core index']
  #allocation1 [shape = 'u32[72,128]{1,0:T(1,128)}', space=vmem, size = 0x9000, scoped, tag = 'internal scratch']
  %s0 = inlined_call_operand.vmem [shape: f32[32,512], index: 0, kind: input, shape index: {}]
  %s1 = inlined_call_operand.vmem [shape: f32[1,512], index: 1, kind: input, shape index: {}]
  %s2 = inlined_call_operand.vmem [shape: f32[1,512], index: 2, kind: input, shape index: {}]
  %s3 = inlined_call_operand.vmem [shape: f32[32,512], index: 3, kind: output, shape index: {}]
  %s4 = sld [smem:[#allocation0]]
  $region22: #{downblock_forward.3} parent=0
    _
  %s6 = ssub.s32 1, %s4
  %s7 = scalar_select 0, %s6, %s4
  // Predicated region
  $region2: #{downblock_forward.3} parent=0 // pred_check
    _
  $region3: #{downblock_forward.3} parent=0 // pred_check_branch
    %9 = sbr.rel (0) target = $region5
  $region4: #{downblock_forward.3} parent=0 // pred_region
    _
  $region5: #{downblock_forward.3} parent=0 // pred_fallthru
    _
  // Predicated region
  $region6: #{downblock_forward.3} parent=0 // pred_check
    _
  $region7: #{downblock_forward.3} parent=0 // pred_check_branch
    %11 = sbr.rel (0) target = $region9
  $region8: #{downblock_forward.3} parent=0 // pred_region
    _
  $region9: #{downblock_forward.3} parent=0 // pred_fallthru
    _
  // Predicated region
  $region10: #{downblock_forward.3} parent=0 // pred_check
    _
  $region11: #{downblock_forward.3} parent=0 // pred_check_branch
    %13 = sbr.rel (0) target = $region13
  $region12: #{downblock_forward.3} parent=0 // pred_region
    _
  $region13: #{downblock_forward.3} parent=0 // pred_fallthru
    _
  %v14 = vld [vmem:[%s0] sm:$0xff]
  %v15 = vld [vmem:[%s0 + $0x8] sm:$0xff]
  %v16 = vld [vmem:[%s0 + $0x10] sm:$0xff]
  %v17 = vld [vmem:[%s0 + $0x18] sm:$0xff]
  %v18 = vld [vmem:[%s0 + $0x20] sm:$0xff]
  %v19 = vld [vmem:[%s0 + $0x28] sm:$0xff]
  %v20 = vld [vmem:[%s0 + $0x30] sm:$0xff]
  %v21 = vld [vmem:[%s0 + $0x38] sm:$0xff]
  %v22 = vld [vmem:[%s0 + $0x40] sm:$0xff]
  %v23 = vld [vmem:[%s0 + $0x48] sm:$0xff]
  %v24 = vld [vmem:[%s0 + $0x50] sm:$0xff]
  %v25 = vld [vmem:[%s0 + $0x58] sm:$0xff]
  %v26 = vld [vmem:[%s0 + $0x60] sm:$0xff]
  %v27 = vld [vmem:[%s0 + $0x68] sm:$0xff]
  %v28 = vld [vmem:[%s0 + $0x70] sm:$0xff]
  %v29 = vld [vmem:[%s0 + $0x78] sm:$0xff]
  %v30 = vld [vmem:[%s1] sm:$0xf]
  %v32 = vperm.slane %v30, 0
  %v33 = vperm.slane %v30, 1
  %v34 = vperm.slane %v30, 2
  %v35 = vperm.slane %v30, 3
  %v40 = vmul.f32 %v14, %v32
  %v41 = vmul.f32 %v15, %v33
  %v42 = vmul.f32 %v16, %v34
  %v43 = vmul.f32 %v17, %v35
  %v44 = vmul.f32 %v18, %v32
  %v45 = vmul.f32 %v19, %v33
  %v46 = vmul.f32 %v20, %v34
  %v47 = vmul.f32 %v21, %v35
  %v48 = vmul.f32 %v22, %v32
  %v49 = vmul.f32 %v23, %v33
  %v50 = vmul.f32 %v24, %v34
  %v51 = vmul.f32 %v25, %v35
  %v52 = vmul.f32 %v26, %v32
  %v53 = vmul.f32 %v27, %v33
  %v54 = vmul.f32 %v28, %v34
  %v55 = vmul.f32 %v29, %v35
  %v56 = vld [vmem:[%s2] sm:$0xf]
  %v58 = vperm.slane %v56, 0
  %v59 = vperm.slane %v56, 1
  %v60 = vperm.slane %v56, 2
  %v61 = vperm.slane %v56, 3
  %v66 = vadd.f32 %v40, %v58
  %v67 = vadd.f32 %v41, %v59
  %v68 = vadd.f32 %v42, %v60
  %v69 = vadd.f32 %v43, %v61
  %v70 = vadd.f32 %v44, %v58
  %v71 = vadd.f32 %v45, %v59
  %v72 = vadd.f32 %v46, %v60
  %v73 = vadd.f32 %v47, %v61
  %v74 = vadd.f32 %v48, %v58
  %v75 = vadd.f32 %v49, %v59
  %v76 = vadd.f32 %v50, %v60
  %v77 = vadd.f32 %v51, %v61
  %v78 = vadd.f32 %v52, %v58
  %v79 = vadd.f32 %v53, %v59
  %v80 = vadd.f32 %v54, %v60
  %v81 = vadd.f32 %v55, %v61
  %v82 = vmul.f32 %v66, 0.2
  %v83 = vmul.f32 %v67, 0.2
  %v84 = vmul.f32 %v68, 0.2
  %v85 = vmul.f32 %v69, 0.2
  %v86 = vmul.f32 %v70, 0.2
  %v87 = vmul.f32 %v71, 0.2
  %v88 = vmul.f32 %v72, 0.2
  %v89 = vmul.f32 %v73, 0.2
  %v90 = vmul.f32 %v74, 0.2
  %v91 = vmul.f32 %v75, 0.2
  %v92 = vmul.f32 %v76, 0.2
  %v93 = vmul.f32 %v77, 0.2
  %v94 = vmul.f32 %v78, 0.2
  %v95 = vmul.f32 %v79, 0.2
  %v96 = vmul.f32 %v80, 0.2
  %v97 = vmul.f32 %v81, 0.2
  %v98 = vmax.f32 %v66, %v82
  %v99 = vmax.f32 %v67, %v83
  %v100 = vmax.f32 %v68, %v84
  %v101 = vmax.f32 %v69, %v85
  %v102 = vmax.f32 %v70, %v86
  %v103 = vmax.f32 %v71, %v87
  %v104 = vmax.f32 %v72, %v88
  %v105 = vmax.f32 %v73, %v89
  %v106 = vmax.f32 %v74, %v90
  %v107 = vmax.f32 %v75, %v91
  %v108 = vmax.f32 %v76, %v92
  %v109 = vmax.f32 %v77, %v93
  %v110 = vmax.f32 %v78, %v94
  %v111 = vmax.f32 %v79, %v95
  %v112 = vmax.f32 %v80, %v96
  %v113 = vmax.f32 %v81, %v97
  %114 = vst [vmem:[%s3] sm:$0xff] %v98
  %115 = vst [vmem:[%s3 + $0x8] sm:$0xff] %v99
  %116 = vst [vmem:[%s3 + $0x10] sm:$0xff] %v100
  %117 = vst [vmem:[%s3 + $0x18] sm:$0xff] %v101
  %118 = vst [vmem:[%s3 + $0x20] sm:$0xff] %v102
  %119 = vst [vmem:[%s3 + $0x28] sm:$0xff] %v103
  %120 = vst [vmem:[%s3 + $0x30] sm:$0xff] %v104
  %121 = vst [vmem:[%s3 + $0x38] sm:$0xff] %v105
  %122 = vst [vmem:[%s3 + $0x40] sm:$0xff] %v106
  %123 = vst [vmem:[%s3 + $0x48] sm:$0xff] %v107
  %124 = vst [vmem:[%s3 + $0x50] sm:$0xff] %v108
  %125 = vst [vmem:[%s3 + $0x58] sm:$0xff] %v109
  %126 = vst [vmem:[%s3 + $0x60] sm:$0xff] %v110
  %127 = vst [vmem:[%s3 + $0x68] sm:$0xff] %v111
  %128 = vst [vmem:[%s3 + $0x70] sm:$0xff] %v112
  %129 = vst [vmem:[%s3 + $0x78] sm:$0xff] %v113
  // Predicated region
  $region14: #{downblock_forward.3} parent=0 // pred_check
    _
  $region15: #{downblock_forward.3} parent=0 // pred_check_branch
    %131 = sbr.rel (0) target = $region17
  $region16: #{downblock_forward.3} parent=0 // pred_region
    _
  $region17: #{downblock_forward.3} parent=0 // pred_fallthru
    _
  // Predicated region
  $region18: #{downblock_forward.3} parent=0 // pred_check
    _
  $region19: #{downblock_forward.3} parent=0 // pred_check_branch
    %133 = sbr.rel (0) target = $region21
  $region20: #{downblock_forward.3} parent=0 // pred_region
    _
  $region21: #{downblock_forward.3} parent=0 // pred_fallthru
    _

// kernel: downblock_forward.2
$region0: #{downblock_forward.2}
  #allocation0 [shape = 'u32[]', space=smem, size = 0x4, offset = 0x4, fixed_abs, tag = 'smem constant byte address 0x4 - core index']
  #allocation1 [shape = 'u32[72,128]{1,0:T(1,128)}', space=vmem, size = 0x9000, scoped, tag = 'internal scratch']
  #allocation2 [shape = 'f32[17,17,64]{2,1,0:T(8,128)}', space=vmem, size = 0x33000, scoped, tag = 'scratch operand']
  %s0 = inlined_call_operand.vmem [shape: f32[2,17,17,64], index: 0, kind: input, shape index: {}, may-alias: {0,1}]
  %s1 = inlined_call_operand.vmem [shape: f32[2,17,17,64], index: 1, kind: input, shape index: {}, may-alias: {0,1}]
  %s2 = inlined_call_operand.vmem [shape: f32[4,64,32], index: 2, kind: input, shape index: {}]
  %s3 = inlined_call_operand.vmem [shape: f32[2,16,16,32], index: 3, kind: output, shape index: {0}]
  %s4 = inlined_call_operand.vmem [shape: f32[2,1,2,32], index: 4, kind: output, shape index: {1}]
  %5 = xla_tuple %s3, %s4
  %s6 = sld [smem:[#allocation0]]
  $region53: #{downblock_forward.2} parent=0
    _
  %s8 = ssub.s32 1, %s6
  %s9 = scalar_select 0, %s8, %s6
  loop: start=0, step=1, limit=4
  $region2: #{downblock_forward.2} parent=0 // loop_pre_header
    _
  $region3: #{downblock_forward.2} parent=0 // loop_header
    %s11 = sphi 0, %s15
    %p12 = scmp.ge.s32.totalorder %s11, 4
    %s18 = sphi 0, %s30
    %s19 = sphi 0, %s26
    %s20 = sphi 0, %s18
    %s21 = sphi 0, %s19
    %s22 = sphi 0, %s20
    %s23 = sphi 0, %s21
    %s35 = sphi 0, %s37
    %s38 = sphi 0, %s35
    %s39 = sphi 0, %s38
    %s55 = sphi 0, %s39
    %s67 = sphi 0, %s69
    %s70 = sphi 0, %s67
    %s71 = sphi 0, %s70
    %s87 = sphi 0, %s71
    %s91 = sphi 0, %s91
    %s93 = sphi 0, %s91
    %s94 = sphi 0, %s93
    %s108 = sphi 0, %s94
    %s116 = sphi 0, %s118
    %s119 = sphi 0, %s116
    %s120 = sphi 0, %s119
    %s136 = sphi 0, %s120
    %s144 = sphi 0, %s146
    %s147 = sphi 0, %s144
    %s148 = sphi 0, %s147
    %s164 = sphi 0, %s148
  $region4: #{downblock_forward.2} parent=0 // loop_header_branch
    %14 = sbr.rel (%p12) target = $region8
  $region5: #{downblock_forward.2} parent=0 // loop_body
    %s16 = ssub.s32 %s11, 1
    %s17 = ssub.s32 %s11, 2
    %s24 = sadd.s32 1, %s19
    %p25 = scmp.ge.s32.totalorder %s24, 1
    %s26 = scalar_select %p25, 0, %s24
    %s27 = sadd.s32 1, %s18
    %s28 = scalar_select %p25, %s27, %s18
    %p29 = scmp.ge.s32.totalorder %s28, 2
    %s30 = scalar_select %p29, 0, %s28
    %s31 = ssub.s32 %s18, %s30
    %s32 = ssub.s32 %s19, %s26
    %s33 = sor.u32 %s31, %s32
    %p34 = scmp.eq.s32.totalorder %s33, 0
    %s36 = sadd.s32 %s35, 1
    %s37 = scalar_select %p34, %s35, %s36
    %p40 = pneg %p34
    %p41 = scmp.eq.s32.totalorder %s11, 1
    %p42 = por %p40, %p41
    %p43 = scmp.ne.s32.totalorder %s35, %s38
    %p44 = scmp.eq.s32.totalorder %s11, 0
    %p45 = por %p43, %p44
    %p46 = scmp.ne.s32.totalorder %s35, %s38
    %p47 = scmp.eq.s32.totalorder %s16, 1
    %p48 = por %p46, %p47
    %p49 = scmp.ne.s32.totalorder %s38, %s39
    %p50 = scmp.eq.s32.totalorder %s16, 0
    %p51 = por %p49, %p50
    %p52 = scmp.ne.s32.totalorder %s38, %s39
    %p53 = scmp.eq.s32.totalorder %s17, 1
    %p54 = por %p52, %p53
    %p56 = scmp.ne.s32.totalorder %s39, %s55
    %p57 = scmp.eq.s32.totalorder %s17, 0
    %p58 = por %p56, %p57
    %s59 = sadd.s32 %s19, 1
    %s60 = smul.u32 %s59, 16
    %s61 = sadd.s32 %s26, 1
    %s62 = smul.u32 %s61, 16
    %s63 = ssub.s32 %s18, %s30
    %s64 = ssub.s32 %s60, %s62
    %s65 = sor.u32 %s63, %s64
    %p66 = scmp.eq.s32.totalorder %s65, 0
    %s68 = sadd.s32 %s67, 1
    %s69 = scalar_select %p66, %s67, %s68
    %p72 = pneg %p66
    %p73 = scmp.eq.s32.totalorder %s11, 1
    %p74 = por %p72, %p73
    %p75 = scmp.ne.s32.totalorder %s67, %s70
    %p76 = scmp.eq.s32.totalorder %s11, 0
    %p77 = por %p75, %p76
    %p78 = scmp.ne.s32.totalorder %s67, %s70
    %p79 = scmp.eq.s32.totalorder %s16, 1
    %p80 = por %p78, %p79
    %p81 = scmp.ne.s32.totalorder %s70, %s71
    %p82 = scmp.eq.s32.totalorder %s16, 0
    %p83 = por %p81, %p82
    %p84 = scmp.ne.s32.totalorder %s70, %s71
    %p85 = scmp.eq.s32.totalorder %s17, 1
    %p86 = por %p84, %p85
    %p88 = scmp.ne.s32.totalorder %s71, %s87
    %p89 = scmp.eq.s32.totalorder %s17, 0
    %p90 = por %p88, %p89
    %s92 = sadd.s32 %s91, 1
    %p95 = scmp.eq.s32.totalorder %s11, 1
    %p96 = scmp.ne.s32.totalorder %s91, %s93
    %p97 = scmp.eq.s32.totalorder %s11, 0
    %p98 = por %p96, %p97
    %p99 = scmp.ne.s32.totalorder %s91, %s93
    %p100 = scmp.eq.s32.totalorder %s16, 1
    %p101 = por %p99, %p100
    %p102 = scmp.ne.s32.totalorder %s93, %s94
    %p103 = scmp.eq.s32.totalorder %s16, 0
    %p104 = por %p102, %p103
    %p105 = scmp.ne.s32.totalorder %s93, %s94
    %p106 = scmp.eq.s32.totalorder %s17, 1
    %p107 = por %p105, %p106
    %p109 = scmp.ne.s32.totalorder %s94, %s108
    %p110 = scmp.eq.s32.totalorder %s17, 0
    %p111 = por %p109, %p110
    %s112 = ssub.s32 %s18, %s30
    %s113 = ssub.s32 %s19, %s26
    %s114 = sor.u32 %s112, %s113
    %p115 = scmp.eq.s32.totalorder %s114, 0
    %s117 = sadd.s32 %s116, 1
    %s118 = scalar_select %p115, %s116, %s117
    %p121 = pneg %p115
    %p122 = scmp.eq.s32.totalorder %s11, 1
    %p123 = por %p121, %p122
    %p124 = scmp.ne.s32.totalorder %s116, %s119
    %p125 = scmp.eq.s32.totalorder %s11, 0
    %p126 = por %p124, %p125
    %p127 = scmp.ne.s32.totalorder %s116, %s119
    %p128 = scmp.eq.s32.totalorder %s16, 1
    %p129 = por %p127, %p128
    %p130 = scmp.ne.s32.totalorder %s119, %s120
    %p131 = scmp.eq.s32.totalorder %s16, 0
    %p132 = por %p130, %p131
    %p133 = scmp.ne.s32.totalorder %s119, %s120
    %p134 = scmp.eq.s32.totalorder %s17, 1
    %p135 = por %p133, %p134
    %p137 = scmp.ne.s32.totalorder %s120, %s136
    %p138 = scmp.eq.s32.totalorder %s17, 0
    %p139 = por %p137, %p138
    %s140 = ssub.s32 %s18, %s30
    %s141 = ssub.s32 %s19, %s26
    %s142 = sor.u32 %s140, %s141
    %p143 = scmp.eq.s32.totalorder %s142, 0
    %s145 = sadd.s32 %s144, 1
    %s146 = scalar_select %p143, %s144, %s145
    %p149 = pneg %p143
    %p150 = scmp.eq.s32.totalorder %s11, 1
    %p151 = por %p149, %p150
    %p152 = scmp.ne.s32.totalorder %s144, %s147
    %p153 = scmp.eq.s32.totalorder %s11, 0
    %p154 = por %p152, %p153
    %p155 = scmp.ne.s32.totalorder %s144, %s147
    %p156 = scmp.eq.s32.totalorder %s16, 1
    %p157 = por %p155, %p156
    %p158 = scmp.ne.s32.totalorder %s147, %s148
    %p159 = scmp.eq.s32.totalorder %s16, 0
    %p160 = por %p158, %p159
    %p161 = scmp.ne.s32.totalorder %s147, %s148
    %p162 = scmp.eq.s32.totalorder %s17, 1
    %p163 = por %p161, %p162
    %p165 = scmp.ne.s32.totalorder %s148, %s164
    %p166 = scmp.eq.s32.totalorder %s17, 0
    %p167 = por %p165, %p166
    %p168 = scmp.le.s32.totalorder 1, %s11
    %p169 = scmp.lt.s32.totalorder %s11, 3
    %p170 = pnand %p168, %p169
    %p171 = pneg %p170
    // Predicated region
    $region9: #{downblock_forward.2} parent=5 // pred_check
      _
    $region10: #{downblock_forward.2} parent=5 // pred_check_branch
      %173 = sbr.rel (%p170) target = $region12
    $region11: #{downblock_forward.2} parent=5 // pred_region
      %s174 = ssub.s32 %s11, 1
      // Predicated region
      $region13: #{downblock_forward.2} parent=11 // pred_check
        %p175 = pneg %p104
      $region14: #{downblock_forward.2} parent=11 // pred_check_branch
        %177 = sbr.rel (%p175) target = $region16
      $region15: #{downblock_forward.2} parent=11 // pred_region
        _
      $region16: #{downblock_forward.2} parent=11 // pred_fallthru
        _
    $region12: #{downblock_forward.2} parent=5 // pred_fallthru
      _
    %p178 = scmp.lt.s32.totalorder %s11, 2
    // Predicated region
    $region17: #{downblock_forward.2} parent=5 // pred_check
      %p179 = pneg %p178
    $region18: #{downblock_forward.2} parent=5 // pred_check_branch
      %181 = sbr.rel (%p179) target = $region20
    $region19: #{downblock_forward.2} parent=5 // pred_region
      // Predicated region
      $region21: #{downblock_forward.2} parent=19 // pred_check
        %p182 = pneg %p45
      $region22: #{downblock_forward.2} parent=19 // pred_check_branch
        %184 = sbr.rel (%p182) target = $region24
      $region23: #{downblock_forward.2} parent=19 // pred_region
        %s185 = smul.u32 16, %s19
        %s186 = ssub.s32 17, %s185
        %p187 = scmp.lt.s32.totalorder %s186, 16
        %s188 = scalar_select %p187, %s186, 16
        %s189 = smul.u32 8, %s188
        %s190 = smul.u32 %s189, 3
        %p191 = scmp.lt.s32.totalorder %s18, 1
        %s192 = scalar_select %p191, %s18, 1
        %p193 = scmp.lt.s32.totalorder %s185, 16
        %s194 = scalar_select %p193, %s185, 16
        %s195 = smul.addr %s194, 3
        %s196 = smul.addr %s192, 51
        %s197 = sadd.s32 %s195, %s196
        %s198 = smul.addr %s197, 8
        %s199 = scalar_lea.vmem %s0, %s198
        %s200 = smul.u32 16, %s19
        %s201 = ssub.s32 17, %s200
        %p202 = scmp.lt.s32.totalorder %s201, 16
        %s203 = scalar_select %p202, %s201, 16
        %s204 = smul.u32 8, %s203
        %s205 = smul.u32 %s204, 3
      $region24: #{downblock_forward.2} parent=19 // pred_fallthru
        _
      // Predicated region
      $region25: #{downblock_forward.2} parent=19 // pred_check
        %p206 = pneg %p77
      $region26: #{downblock_forward.2} parent=19 // pred_check_branch
        %208 = sbr.rel (%p206) target = $region28
      $region27: #{downblock_forward.2} parent=19 // pred_region
        %s209 = sadd.s32 %s19, 1
        %s210 = smul.u32 %s209, 16
        %p211 = scmp.lt.s32.totalorder %s18, 1
        %s212 = scalar_select %p211, %s18, 1
        %p213 = scmp.lt.s32.totalorder %s210, 16
        %s214 = scalar_select %p213, %s210, 16
        %s215 = smul.addr %s214, 3
        %s216 = smul.addr %s212, 51
        %s217 = sadd.s32 %s215, %s216
        %s218 = smul.addr %s217, 8
        %s219 = scalar_lea.vmem %s1, %s218
        %s220 = sadd.s32 %s19, 1
        %s221 = smul.u32 %s220, 16
      $region28: #{downblock_forward.2} parent=19 // pred_fallthru
        _
    $region20: #{downblock_forward.2} parent=5 // pred_fallthru
      _
    %p222 = scmp.le.s32.totalorder 1, %s11
    %p223 = scmp.lt.s32.totalorder %s11, 3
    %p224 = pnand %p222, %p223
    %p225 = pneg %p224
    // Predicated region
    $region29: #{downblock_forward.2} parent=5 // pred_check
      _
    $region30: #{downblock_forward.2} parent=5 // pred_check_branch
      %227 = sbr.rel (%p224) target = $region32
    $region31: #{downblock_forward.2} parent=5 // pred_region
      %s228 = ssub.s32 %s11, 1
      %s229 = smul.u32 16, %s21
      %s230 = ssub.s32 17, %s229
      %p231 = scmp.lt.s32.totalorder %s230, 16
      %s232 = scalar_select %p231, %s230, 16
      %s233 = smul.u32 8, %s232
      %s234 = smul.u32 %s233, 3
      %p235 = scmp.lt.s32.totalorder %s20, 1
      %s236 = scalar_select %p235, %s20, 1
      %p237 = scmp.lt.s32.totalorder %s229, 16
      %s238 = scalar_select %p237, %s229, 16
      %s239 = smul.addr %s238, 3
      %s240 = smul.addr %s236, 51
      %s241 = sadd.s32 %s239, %s240
      %s242 = smul.addr %s241, 8
      %s243 = scalar_lea.vmem %s0, %s242
      %p244 = pneg %p51
      %p245 = pneg %p48
      %s246 = sadd.s32 %s21, 1
      %s247 = smul.u32 %s246, 16
      %p248 = scmp.lt.s32.totalorder %s20, 1
      %s249 = scalar_select %p248, %s20, 1
      %p250 = scmp.lt.s32.totalorder %s247, 16
      %s251 = scalar_select %p250, %s247, 16
      %s252 = smul.addr %s251, 3
      %s253 = smul.addr %s249, 51
      %s254 = sadd.s32 %s252, %s253
      %s255 = smul.addr %s254, 8
      %s256 = scalar_lea.vmem %s1, %s255
      %p257 = pneg %p83
      %p258 = pneg %p80
      %p259 = pneg %p104
      %p260 = pneg %p101
      %p261 = pneg %p132
      %p262 = pneg %p129
      %s263 = smul.u32 16, %s21
      %p264 = scmp.lt.s32.totalorder %s20, 1
      %s265 = scalar_select %p264, %s20, 1
      %p266 = scmp.lt.s32.totalorder %s263, 15
      %s267 = scalar_select %p266, %s263, 15
      %s268 = smul.addr %s267, 2
      %s269 = smul.addr %s265, 32
      %s270 = sadd.s32 %s268, %s269
      %s271 = smul.addr %s270, 8
      %s272 = scalar_lea.vmem %s3, %s271
      %p273 = pneg %p160
      %p274 = pneg %p157
      %p275 = scmp.lt.s32.totalorder %s20, 1
      %s276 = scalar_select %p275, %s20, 1
      %p277 = scmp.lt.s32.totalorder %s21, 0
      %s278 = scalar_select %p277, %s21, 0
      %s279 = sadd.s32 %s278, %s276
      %s280 = smul.addr %s279, 2
      %s281 = scalar_lea.vmem %s4, %s280
      %s282 = smul.u32 16, %s21
      %s283 = ssub.s32 17, %s282
      %p284 = scmp.lt.s32.totalorder %s283, 16
      %s285 = scalar_select %p284, %s283, 16
      %s286 = smul.u32 8, %s285
      %s287 = smul.u32 %s286, 3
      %p288 = scmp.lt.s32.totalorder %s20, 1
      %s289 = scalar_select %p288, %s20, 1
      %p290 = scmp.lt.s32.totalorder %s282, 16
      %s291 = scalar_select %p290, %s282, 16
      %s292 = smul.addr %s291, 3
      %s293 = smul.addr %s289, 51
      %s294 = sadd.s32 %s292, %s293
      %s295 = smul.addr %s294, 8
      %s296 = scalar_lea.vmem %s0, %s295
      %s297 = smul.u32 16, %s21
      %s298 = ssub.s32 17, %s297
      %p299 = scmp.lt.s32.totalorder %s298, 16
      %s300 = scalar_select %p299, %s298, 16
      %s301 = smul.u32 8, %s300
      %s302 = smul.u32 %s301, 3
      %s303 = sadd.s32 %s21, 1
      %s304 = smul.u32 %s303, 16
      %p305 = scmp.lt.s32.totalorder %s20, 1
      %s306 = scalar_select %p305, %s20, 1
      %p307 = scmp.lt.s32.totalorder %s304, 16
      %s308 = scalar_select %p307, %s304, 16
      %s309 = smul.addr %s308, 3
      %s310 = smul.addr %s306, 51
      %s311 = sadd.s32 %s309, %s310
      %s312 = smul.addr %s311, 8
      %s313 = scalar_lea.vmem %s1, %s312
      %s314 = sadd.s32 %s21, 1
      %s315 = smul.u32 %s314, 16
      %s316 = smul.u32 16, %s21
      %p317 = scmp.lt.s32.totalorder %s20, 1
      %s318 = scalar_select %p317, %s20, 1
      %p319 = scmp.lt.s32.totalorder %s316, 15
      %s320 = scalar_select %p319, %s316, 15
      %s321 = smul.addr %s320, 2
      %s322 = smul.addr %s318, 32
      %s323 = sadd.s32 %s321, %s322
      %s324 = smul.addr %s323, 8
      %s325 = scalar_lea.vmem %s3, %s324
      %s326 = smul.u32 16, %s21
      %p327 = scmp.lt.s32.totalorder %s20, 1
      %s328 = scalar_select %p327, %s20, 1
      %p329 = scmp.lt.s32.totalorder %s21, 0
      %s330 = scalar_select %p329, %s21, 0
      %s331 = sadd.s32 %s330, %s328
      %s332 = smul.addr %s331, 2
      %s333 = scalar_lea.vmem %s4, %s332
      %v334 = vld [vmem:[%s296] sm:$0xff]
      %v335 = vld [vmem:[%s296 + $0x8] sm:$0xff]
      %v336 = vld [vmem:[%s296 + $0x10] sm:$0x1]
      %v337 = vld [vmem:[%s296 + $0x18] sm:$0xff]
      %v338 = vld [vmem:[%s296 + $0x20] sm:$0xff]
      %v339 = vld [vmem:[%s296 + $0x28] sm:$0x1]
      %v340 = vld [vmem:[%s296 + $0x30] sm:$0xff]
      %v341 = vld [vmem:[%s296 + $0x38] sm:$0xff]
      %v342 = vld [vmem:[%s296 + $0x40] sm:$0x1]
      %v343 = vld [vmem:[%s296 + $0x48] sm:$0xff]
      %v344 = vld [vmem:[%s296 + $0x50] sm:$0xff]
      %v345 = vld [vmem:[%s296 + $0x58] sm:$0x1]
      %v346 = vld [vmem:[%s296 + $0x60] sm:$0xff]
      %v347 = vld [vmem:[%s296 + $0x68] sm:$0xff]
      %v348 = vld [vmem:[%s296 + $0x70] sm:$0x1]
      %v349 = vld [vmem:[%s296 + $0x78] sm:$0xff]
      %v350 = vld [vmem:[%s296 + $0x80] sm:$0xff]
      %v351 = vld [vmem:[%s296 + $0x88] sm:$0x1]
      %v352 = vld [vmem:[%s296 + $0x90] sm:$0xff]
      %v353 = vld [vmem:[%s296 + $0x98] sm:$0xff]
      %v354 = vld [vmem:[%s296 + $0xa0] sm:$0x1]
      %v355 = vld [vmem:[%s296 + $0xa8] sm:$0xff]
      %v356 = vld [vmem:[%s296 + $0xb0] sm:$0xff]
      %v357 = vld [vmem:[%s296 + $0xb8] sm:$0x1]
      %v358 = vld [vmem:[%s296 + $0xc0] sm:$0xff]
      %v359 = vld [vmem:[%s296 + $0xc8] sm:$0xff]
      %v360 = vld [vmem:[%s296 + $0xd0] sm:$0x1]
      %v361 = vld [vmem:[%s296 + $0xd8] sm:$0xff]
      %v362 = vld [vmem:[%s296 + $0xe0] sm:$0xff]
      %v363 = vld [vmem:[%s296 + $0xe8] sm:$0x1]
      %v364 = vld [vmem:[%s296 + $0xf0] sm:$0xff]
      %v365 = vld [vmem:[%s296 + $0xf8] sm:$0xff]
      %v366 = vld [vmem:[%s296 + $0x100] sm:$0x1]
      %v367 = vld [vmem:[%s296 + $0x108] sm:$0xff]
      %v368 = vld [vmem:[%s296 + $0x110] sm:$0xff]
      %v369 = vld [vmem:[%s296 + $0x118] sm:$0x1]
      %v370 = vld [vmem:[%s296 + $0x120] sm:$0xff]
      %v371 = vld [vmem:[%s296 + $0x128] sm:$0xff]
      %v372 = vld [vmem:[%s296 + $0x130] sm:$0x1]
      %v373 = vld [vmem:[%s296 + $0x138] sm:$0xff]
      %v374 = vld [vmem:[%s296 + $0x140] sm:$0xff]
      %v375 = vld [vmem:[%s296 + $0x148] sm:$0x1]
      %v376 = vld [vmem:[%s296 + $0x150] sm:$0xff]
      %v377 = vld [vmem:[%s296 + $0x158] sm:$0xff]
      %v378 = vld [vmem:[%s296 + $0x160] sm:$0x1]
      %v379 = vld [vmem:[%s296 + $0x168] sm:$0xff]
      %v380 = vld [vmem:[%s296 + $0x170] sm:$0xff]
      %v381 = vld [vmem:[%s296 + $0x178] sm:$0x1]
      %vm382 = vcmask 523264
      %383 = vst.msk [vmem:[#allocation2] sm:$0xff] %vm382, %v334
      %384 = vst.msk [vmem:[#allocation2 + $0x8] sm:$0xff] %vm382, %v335
      %vm385 = vcmask 516096
      %386 = vst.msk [vmem:[#allocation2 + $0x10] sm:$0x1] %vm385, %v336
      %387 = vst.msk [vmem:[#allocation2 + $0x18] sm:$0xff] %vm382, %v337
      %388 = vst.msk [vmem:[#allocation2 + $0x20] sm:$0xff] %vm382, %v338
      %389 = vst.msk [vmem:[#allocation2 + $0x28] sm:$0x1] %vm385, %v339
      %390 = vst.msk [vmem:[#allocation2 + $0x30] sm:$0xff] %vm382, %v340
      %391 = vst.msk [vmem:[#allocation2 + $0x38] sm:$0xff] %vm382, %v341
      %392 = vst.msk [vmem:[#allocation2 + $0x40] sm:$0x1] %vm385, %v342
      %393 = vst.msk [vmem:[#allocation2 + $0x48] sm:$0xff] %vm382, %v343
      %394 = vst.msk [vmem:[#allocation2 + $0x50] sm:$0xff] %vm382, %v344
      %395 = vst.msk [vmem:[#allocation2 + $0x58] sm:$0x1] %vm385, %v345
      %396 = vst.msk [vmem:[#allocation2 + $0x60] sm:$0xff] %vm382, %v346
      %397 = vst.msk [vmem:[#allocation2 + $0x68] sm:$0xff] %vm382, %v347
      %398 = vst.msk [vmem:[#allocation2 + $0x70] sm:$0x1] %vm385, %v348
      %399 = vst.msk [vmem:[#allocation2 + $0x78] sm:$0xff] %vm382, %v349
      %400 = vst.msk [vmem:[#allocation2 + $0x80] sm:$0xff] %vm382, %v350
      %401 = vst.msk [vmem:[#allocation2 + $0x88] sm:$0x1] %vm385, %v351
      %402 = vst.msk [vmem:[#allocation2 + $0x90] sm:$0xff] %vm382, %v352
      %403 = vst.msk [vmem:[#allocation2 + $0x98] sm:$0xff] %vm382, %v353
      %404 = vst.msk [vmem:[#allocation2 + $0xa0] sm:$0x1] %vm385, %v354
      %405 = vst.msk [vmem:[#allocation2 + $0xa8] sm:$0xff] %vm382, %v355
      %406 = vst.msk [vmem:[#allocation2 + $0xb0] sm:$0xff] %vm382, %v356
      %407 = vst.msk [vmem:[#allocation2 + $0xb8] sm:$0x1] %vm385, %v357
      %408 = vst.msk [vmem:[#allocation2 + $0xc0] sm:$0xff] %vm382, %v358
      %409 = vst.msk [vmem:[#allocation2 + $0xc8] sm:$0xff] %vm382, %v359
      %410 = vst.msk [vmem:[#allocation2 + $0xd0] sm:$0x1] %vm385, %v360
      %411 = vst.msk [vmem:[#allocation2 + $0xd8] sm:$0xff] %vm382, %v361
      %412 = vst.msk [vmem:[#allocation2 + $0xe0] sm:$0xff] %vm382, %v362
      %413 = vst.msk [vmem:[#allocation2 + $0xe8] sm:$0x1] %vm385, %v363
      %414 = vst.msk [vmem:[#allocation2 + $0xf0] sm:$0xff] %vm382, %v364
      %415 = vst.msk [vmem:[#allocation2 + $0xf8] sm:$0xff] %vm382, %v365
      %416 = vst.msk [vmem:[#allocation2 + $0x100] sm:$0x1] %vm385, %v366
      %417 = vst.msk [vmem:[#allocation2 + $0x108] sm:$0xff] %vm382, %v367
      %418 = vst.msk [vmem:[#allocation2 + $0x110] sm:$0xff] %vm382, %v368
      %419 = vst.msk [vmem:[#allocation2 + $0x118] sm:$0x1] %vm385, %v369
      %420 = vst.msk [vmem:[#allocation2 + $0x120] sm:$0xff] %vm382, %v370
      %421 = vst.msk [vmem:[#allocation2 + $0x128] sm:$0xff] %vm382, %v371
      %422 = vst.msk [vmem:[#allocation2 + $0x130] sm:$0x1] %vm385, %v372
      %423 = vst.msk [vmem:[#allocation2 + $0x138] sm:$0xff] %vm382, %v373
      %424 = vst.msk [vmem:[#allocation2 + $0x140] sm:$0xff] %vm382, %v374
      %425 = vst.msk [vmem:[#allocation2 + $0x148] sm:$0x1] %vm385, %v375
      %426 = vst.msk [vmem:[#allocation2 + $0x150] sm:$0xff] %vm382, %v376
      %427 = vst.msk [vmem:[#allocation2 + $0x158] sm:$0xff] %vm382, %v377
      %428 = vst.msk [vmem:[#allocation2 + $0x160] sm:$0x1] %vm385, %v378
      %429 = vst.msk [vmem:[#allocation2 + $0x168] sm:$0xff] %vm382, %v379
      %430 = vst.msk [vmem:[#allocation2 + $0x170] sm:$0xff] %vm382, %v380
      %431 = vst.msk [vmem:[#allocation2 + $0x178] sm:$0x1] %vm385, %v381
      %v432 = vld [vmem:[%s313] sm:$0xff]
      %v433 = vld [vmem:[%s313 + $0x8] sm:$0xff]
      %v434 = vld [vmem:[%s313 + $0x10] sm:$0x1]
      %s435 = scalar_lea.vmem [#allocation2], 384
      %436 = vst.msk [vmem:[%s435] sm:$0xff] %vm382, %v432
      %437 = vst.msk [vmem:[%s435 + $0x8] sm:$0xff] %vm382, %v433
      %438 = vst.msk [vmem:[%s435 + $0x10] sm:$0x1] %vm385, %v434
      %v439 = vld [vmem:[#allocation2] sm:$0xff]
      %v440 = vld [vmem:[#allocation2 + $0x8] sm:$0xff]
      %v441 = vld [vmem:[#allocation2 + $0x18] sm:$0xff]
      %v442 = vld [vmem:[#allocation2 + $0x20] sm:$0xff]
      %v443 = vld [vmem:[#allocation2 + $0x30] sm:$0xff]
      %v444 = vld [vmem:[#allocation2 + $0x38] sm:$0xff]
      %v445 = vld [vmem:[#allocation2 + $0x48] sm:$0xff]
      %v446 = vld [vmem:[#allocation2 + $0x50] sm:$0xff]
      %v447 = vld [vmem:[#allocation2 + $0x60] sm:$0xff]
      %v448 = vld [vmem:[#allocation2 + $0x68] sm:$0xff]
      %v449 = vld [vmem:[#allocation2 + $0x78] sm:$0xff]
      %v450 = vld [vmem:[#allocation2 + $0x80] sm:$0xff]
      %v451 = vld [vmem:[#allocation2 + $0x90] sm:$0xff]
      %v452 = vld [vmem:[#allocation2 + $0x98] sm:$0xff]
      %v453 = vld [vmem:[#allocation2 + $0xa8] sm:$0xff]
      %v454 = vld [vmem:[#allocation2 + $0xb0] sm:$0xff]
      %v455 = vld [vmem:[#allocation2 + $0xc0] sm:$0xff]
      %v456 = vld [vmem:[#allocation2 + $0xc8] sm:$0xff]
      %v457 = vld [vmem:[#allocation2 + $0xd8] sm:$0xff]
      %v458 = vld [vmem:[#allocation2 + $0xe0] sm:$0xff]
      %v459 = vld [vmem:[#allocation2 + $0xf0] sm:$0xff]
      %v460 = vld [vmem:[#allocation2 + $0xf8] sm:$0xff]
      %v461 = vld [vmem:[#allocation2 + $0x108] sm:$0xff]
      %v462 = vld [vmem:[#allocation2 + $0x110] sm:$0xff]
      %v463 = vld [vmem:[#allocation2 + $0x120] sm:$0xff]
      %v464 = vld [vmem:[#allocation2 + $0x128] sm:$0xff]
      %v465 = vld [vmem:[#allocation2 + $0x138] sm:$0xff]
      %v466 = vld [vmem:[#allocation2 + $0x140] sm:$0xff]
      %v467 = vld [vmem:[#allocation2 + $0x150] sm:$0xff]
      %v468 = vld [vmem:[#allocation2 + $0x158] sm:$0xff]
      %v469 = vld [vmem:[#allocation2 + $0x168] sm:$0xff]
      %v470 = vld [vmem:[#allocation2 + $0x170] sm:$0xff]
      %v471 = vld [vmem:[%s2] sm:$0xff]
      %v472 = vld [vmem:[%s2 + $0x8] sm:$0xff]
      %v473 = vld [vmem:[%s2 + $0x10] sm:$0xff]
      %v474 = vld [vmem:[%s2 + $0x18] sm:$0xff]
      %v475 = vld [vmem:[%s2 + $0x20] sm:$0xff]
      %v476 = vld [vmem:[%s2 + $0x28] sm:$0xff]
      %v477 = vld [vmem:[%s2 + $0x30] sm:$0xff]
      %v478 = vld [vmem:[%s2 + $0x38] sm:$0xff]
      %v479 = vld [vmem:[#allocation2 + $0x1] sm:$0xff]
      %v480 = vld [vmem:[#allocation2 + $0x9] sm:$0xff]
      %v481 = vld [vmem:[#allocation2 + $0x19] sm:$0xff]
      %v482 = vld [vmem:[#allocation2 + $0x21] sm:$0xff]
      %v483 = vld [vmem:[#allocation2 + $0x31] sm:$0xff]
      %v484 = vld [vmem:[#allocation2 + $0x39] sm:$0xff]
      %v485 = vld [vmem:[#allocation2 + $0x49] sm:$0xff]
      %v486 = vld [vmem:[#allocation2 + $0x51] sm:$0xff]
      %v487 = vld [vmem:[#allocation2 + $0x61] sm:$0xff]
      %v488 = vld [vmem:[#allocation2 + $0x69] sm:$0xff]
      %v489 = vld [vmem:[#allocation2 + $0x79] sm:$0xff]
      %v490 = vld [vmem:[#allocation2 + $0x81] sm:$0xff]
      %v491 = vld [vmem:[#allocation2 + $0x91] sm:$0xff]
      %v492 = vld [vmem:[#allocation2 + $0x99] sm:$0xff]
      %v493 = vld [vmem:[#allocation2 + $0xa9] sm:$0xff]
      %v494 = vld [vmem:[#allocation2 + $0xb1] sm:$0xff]
      %v495 = vld [vmem:[#allocation2 + $0xc1] sm:$0xff]
      %v496 = vld [vmem:[#allocation2 + $0xc9] sm:$0xff]
      %v497 = vld [vmem:[#allocation2 + $0xd9] sm:$0xff]
      %v498 = vld [vmem:[#allocation2 + $0xe1] sm:$0xff]
      %v499 = vld [vmem:[#allocation2 + $0xf1] sm:$0xff]
      %v500 = vld [vmem:[#allocation2 + $0xf9] sm:$0xff]
      %v501 = vld [vmem:[#allocation2 + $0x109] sm:$0xff]
      %v502 = vld [vmem:[#allocation2 + $0x111] sm:$0xff]
      %v503 = vld [vmem:[#allocation2 + $0x121] sm:$0xff]
      %v504 = vld [vmem:[#allocation2 + $0x129] sm:$0xff]
      %v505 = vld [vmem:[#allocation2 + $0x139] sm:$0xff]
      %v506 = vld [vmem:[#allocation2 + $0x141] sm:$0xff]
      %v507 = vld [vmem:[#allocation2 + $0x151] sm:$0xff]
      %v508 = vld [vmem:[#allocation2 + $0x159] sm:$0xff]
      %v509 = vld [vmem:[#allocation2 + $0x169] sm:$0xff]
      %v510 = vld [vmem:[#allocation2 + $0x171] sm:$0xff]
      %s511 = scalar_lea.vmem %s2, 64
      %v512 = vld [vmem:[%s511] sm:$0xff]
      %v513 = vld [vmem:[%s511 + $0x8] sm:$0xff]
      %v514 = vld [vmem:[%s511 + $0x10] sm:$0xff]
      %v515 = vld [vmem:[%s511 + $0x18] sm:$0xff]
      %v516 = vld [vmem:[%s511 + $0x20] sm:$0xff]
      %v517 = vld [vmem:[%s511 + $0x28] sm:$0xff]
      %v518 = vld [vmem:[%s511 + $0x30] sm:$0xff]
      %v519 = vld [vmem:[%s511 + $0x38] sm:$0xff]
      %v521 = vsel %vm382, %v479, 0
      %v524 = vsel %vm382, %v480, 0
      %v527 = vsel %vm382, %v481, 0
      %v530 = vsel %vm382, %v482, 0
      %v533 = vsel %vm382, %v483, 0
      %v536 = vsel %vm382, %v484, 0
      %v539 = vsel %vm382, %v485, 0
      %v542 = vsel %vm382, %v486, 0
      %v545 = vsel %vm382, %v487, 0
      %v548 = vsel %vm382, %v488, 0
      %v551 = vsel %vm382, %v489, 0
      %v554 = vsel %vm382, %v490, 0
      %v557 = vsel %vm382, %v491, 0
      %v560 = vsel %vm382, %v492, 0
      %v563 = vsel %vm382, %v493, 0
      %v566 = vsel %vm382, %v494, 0
      %v569 = vsel %vm382, %v495, 0
      %v572 = vsel %vm382, %v496, 0
      %v575 = vsel %vm382, %v497, 0
      %v578 = vsel %vm382, %v498, 0
      %v581 = vsel %vm382, %v499, 0
      %v584 = vsel %vm382, %v500, 0
      %v587 = vsel %vm382, %v501, 0
      %v590 = vsel %vm382, %v502, 0
      %v593 = vsel %vm382, %v503, 0
      %v596 = vsel %vm382, %v504, 0
      %v599 = vsel %vm382, %v505, 0
      %v602 = vsel %vm382, %v506, 0
      %v605 = vsel %vm382, %v507, 0
      %v608 = vsel %vm382, %v508, 0
      %v611 = vsel %vm382, %v509, 0
      %v614 = vsel %vm382, %v510, 0
      %616 = vmatpush.msra.mxu0 0.0
      %617 = vmatpush.msra.mxu0 0.0
      %618 = vmatpush.msra.mxu0 0.0
      %619 = vmatpush.msra.mxu0 0.0
      %620 = vmatpush.msra.mxu0 0.0
      %621 = vmatpush.msra.mxu0 0.0
      %622 = vmatpush.msra.mxu0 0.0
      %623 = vmatpush.msra.mxu0 0.0
      %624 = vmatpush.msra.mxu0 %v519
      %625 = vmatpush.msra.mxu0 %v518
      %626 = vmatpush.msra.mxu0 %v517
      %627 = vmatpush.msra.mxu0 %v516
      %628 = vmatpush.msra.mxu0 %v515
      %629 = vmatpush.msra.mxu0 %v514
      %630 = vmatpush.msra.mxu0 %v513
      %631 = vmatpush.msra.mxu0 %v512
      %632 = vmatmul.f32.gmra.mxu0 %v521
      %v633 = vpop.f32.mrf.mxu0
      %v634 = vadd.f32 0.0, %v633
      %635 = vmatmul.f32.gmra.mxu0 %v524
      %v636 = vpop.f32.mrf.mxu0
      %v637 = vadd.f32 0.0, %v636
      %638 = vmatmul.f32.gmra.mxu0 %v527
      %v639 = vpop.f32.mrf.mxu0
      %v640 = vadd.f32 0.0, %v639
      %641 = vmatmul.f32.gmra.mxu0 %v530
      %v642 = vpop.f32.mrf.mxu0
      %v643 = vadd.f32 0.0, %v642
      %644 = vmatmul.f32.gmra.mxu0 %v533
      %v645 = vpop.f32.mrf.mxu0
      %v646 = vadd.f32 0.0, %v645
      %647 = vmatmul.f32.gmra.mxu0 %v536
      %v648 = vpop.f32.mrf.mxu0
      %v649 = vadd.f32 0.0, %v648
      %650 = vmatmul.f32.gmra.mxu0 %v539
      %v651 = vpop.f32.mrf.mxu0
      %v652 = vadd.f32 0.0, %v651
      %653 = vmatmul.f32.gmra.mxu0 %v542
      %v654 = vpop.f32.mrf.mxu0
      %v655 = vadd.f32 0.0, %v654
      %656 = vmatmul.f32.gmra.mxu0 %v545
      %v657 = vpop.f32.mrf.mxu0
      %v658 = vadd.f32 0.0, %v657
      %659 = vmatmul.f32.gmra.mxu0 %v548
      %v660 = vpop.f32.mrf.mxu0
      %v661 = vadd.f32 0.0, %v660
      %662 = vmatmul.f32.gmra.mxu0 %v551
      %v663 = vpop.f32.mrf.mxu0
      %v664 = vadd.f32 0.0, %v663
      %665 = vmatmul.f32.gmra.mxu0 %v554
      %v666 = vpop.f32.mrf.mxu0
      %v667 = vadd.f32 0.0, %v666
      %668 = vmatmul.f32.gmra.mxu0 %v557
      %v669 = vpop.f32.mrf.mxu0
      %v670 = vadd.f32 0.0, %v669
      %671 = vmatmul.f32.gmra.mxu0 %v560
      %v672 = vpop.f32.mrf.mxu0
      %v673 = vadd.f32 0.0, %v672
      %674 = vmatmul.f32.gmra.mxu0 %v563
      %v675 = vpop.f32.mrf.mxu0
      %v676 = vadd.f32 0.0, %v675
      %677 = vmatmul.f32.gmra.mxu0 %v566
      %v678 = vpop.f32.mrf.mxu0
      %v679 = vadd.f32 0.0, %v678
      %680 = vmatmul.f32.gmra.mxu0 %v569
      %v681 = vpop.f32.mrf.mxu0
      %v682 = vadd.f32 0.0, %v681
      %683 = vmatmul.f32.gmra.mxu0 %v572
      %v684 = vpop.f32.mrf.mxu0
      %v685 = vadd.f32 0.0, %v684
      %686 = vmatmul.f32.gmra.mxu0 %v575
      %v687 = vpop.f32.mrf.mxu0
      %v688 = vadd.f32 0.0, %v687
      %689 = vmatmul.f32.gmra.mxu0 %v578
      %v690 = vpop.f32.mrf.mxu0
      %v691 = vadd.f32 0.0, %v690
      %692 = vmatmul.f32.gmra.mxu0 %v581
      %v693 = vpop.f32.mrf.mxu0
      %v694 = vadd.f32 0.0, %v693
      %695 = vmatmul.f32.gmra.mxu0 %v584
      %v696 = vpop.f32.mrf.mxu0
      %v697 = vadd.f32 0.0, %v696
      %698 = vmatmul.f32.gmra.mxu0 %v587
      %v699 = vpop.f32.mrf.mxu0
      %v700 = vadd.f32 0.0, %v699
      %701 = vmatmul.f32.gmra.mxu0 %v590
      %v702 = vpop.f32.mrf.mxu0
      %v703 = vadd.f32 0.0, %v702
      %704 = vmatmul.f32.gmra.mxu0 %v593
      %v705 = vpop.f32.mrf.mxu0
      %v706 = vadd.f32 0.0, %v705
      %707 = vmatmul.f32.gmra.mxu0 %v596
      %v708 = vpop.f32.mrf.mxu0
      %v709 = vadd.f32 0.0, %v708
      %710 = vmatmul.f32.gmra.mxu0 %v599
      %v711 = vpop.f32.mrf.mxu0
      %v712 = vadd.f32 0.0, %v711
      %713 = vmatmul.f32.gmra.mxu0 %v602
      %v714 = vpop.f32.mrf.mxu0
      %v715 = vadd.f32 0.0, %v714
      %716 = vmatmul.f32.gmra.mxu0 %v605
      %v717 = vpop.f32.mrf.mxu0
      %v718 = vadd.f32 0.0, %v717
      %719 = vmatmul.f32.gmra.mxu0 %v608
      %v720 = vpop.f32.mrf.mxu0
      %v721 = vadd.f32 0.0, %v720
      %722 = vmatmul.f32.gmra.mxu0 %v611
      %v723 = vpop.f32.mrf.mxu0
      %v724 = vadd.f32 0.0, %v723
      %725 = vmatmul.f32.gmra.mxu0 %v614
      %v726 = vpop.f32.mrf.mxu0
      %v727 = vadd.f32 0.0, %v726
      %728 = vdwg.mxu0
      %v730 = vsel %vm382, %v439, 0
      %v733 = vsel %vm382, %v440, 0
      %v736 = vsel %vm382, %v441, 0
      %v739 = vsel %vm382, %v442, 0
      %v742 = vsel %vm382, %v443, 0
      %v745 = vsel %vm382, %v444, 0
      %v748 = vsel %vm382, %v445, 0
      %v751 = vsel %vm382, %v446, 0
      %v754 = vsel %vm382, %v447, 0
      %v757 = vsel %vm382, %v448, 0
      %v760 = vsel %vm382, %v449, 0
      %v763 = vsel %vm382, %v450, 0
      %v766 = vsel %vm382, %v451, 0
      %v769 = vsel %vm382, %v452, 0
      %v772 = vsel %vm382, %v453, 0
      %v775 = vsel %vm382, %v454, 0
      %v778 = vsel %vm382, %v455, 0
      %v781 = vsel %vm382, %v456, 0
      %v784 = vsel %vm382, %v457, 0
      %v787 = vsel %vm382, %v458, 0
      %v790 = vsel %vm382, %v459, 0
      %v793 = vsel %vm382, %v460, 0
      %v796 = vsel %vm382, %v461, 0
      %v799 = vsel %vm382, %v462, 0
      %v802 = vsel %vm382, %v463, 0
      %v805 = vsel %vm382, %v464, 0
      %v808 = vsel %vm382, %v465, 0
      %v811 = vsel %vm382, %v466, 0
      %v814 = vsel %vm382, %v467, 0
      %v817 = vsel %vm382, %v468, 0
      %v820 = vsel %vm382, %v469, 0
      %v823 = vsel %vm382, %v470, 0
      %825 = vmatpush.msra.mxu0 0.0
      %826 = vmatpush.msra.mxu0 0.0
      %827 = vmatpush.msra.mxu0 0.0
      %828 = vmatpush.msra.mxu0 0.0
      %829 = vmatpush.msra.mxu0 0.0
      %830 = vmatpush.msra.mxu0 0.0
      %831 = vmatpush.msra.mxu0 0.0
      %832 = vmatpush.msra.mxu0 0.0
      %833 = vmatpush.msra.mxu0 %v478
      %834 = vmatpush.msra.mxu0 %v477
      %835 = vmatpush.msra.mxu0 %v476
      %836 = vmatpush.msra.mxu0 %v475
      %837 = vmatpush.msra.mxu0 %v474
      %838 = vmatpush.msra.mxu0 %v473
      %839 = vmatpush.msra.mxu0 %v472
      %840 = vmatpush.msra.mxu0 %v471
      %841 = vmatmul.f32.gmra.mxu0 %v730
      %v842 = vpop.f32.mrf.mxu0
      %v843 = vadd.f32 %v634, %v842
      %844 = vmatmul.f32.gmra.mxu0 %v733
      %v845 = vpop.f32.mrf.mxu0
      %v846 = vadd.f32 %v637, %v845
      %847 = vmatmul.f32.gmra.mxu0 %v736
      %v848 = vpop.f32.mrf.mxu0
      %v849 = vadd.f32 %v640, %v848
      %850 = vmatmul.f32.gmra.mxu0 %v739
      %v851 = vpop.f32.mrf.mxu0
      %v852 = vadd.f32 %v643, %v851
      %853 = vmatmul.f32.gmra.mxu0 %v742
      %v854 = vpop.f32.mrf.mxu0
      %v855 = vadd.f32 %v646, %v854
      %856 = vmatmul.f32.gmra.mxu0 %v745
      %v857 = vpop.f32.mrf.mxu0
      %v858 = vadd.f32 %v649, %v857
      %859 = vmatmul.f32.gmra.mxu0 %v748
      %v860 = vpop.f32.mrf.mxu0
      %v861 = vadd.f32 %v652, %v860
      %862 = vmatmul.f32.gmra.mxu0 %v751
      %v863 = vpop.f32.mrf.mxu0
      %v864 = vadd.f32 %v655, %v863
      %865 = vmatmul.f32.gmra.mxu0 %v754
      %v866 = vpop.f32.mrf.mxu0
      %v867 = vadd.f32 %v658, %v866
      %868 = vmatmul.f32.gmra.mxu0 %v757
      %v869 = vpop.f32.mrf.mxu0
      %v870 = vadd.f32 %v661, %v869
      %871 = vmatmul.f32.gmra.mxu0 %v760
      %v872 = vpop.f32.mrf.mxu0
      %v873 = vadd.f32 %v664, %v872
      %874 = vmatmul.f32.gmra.mxu0 %v763
      %v875 = vpop.f32.mrf.mxu0
      %v876 = vadd.f32 %v667, %v875
      %877 = vmatmul.f32.gmra.mxu0 %v766
      %v878 = vpop.f32.mrf.mxu0
      %v879 = vadd.f32 %v670, %v878
      %880 = vmatmul.f32.gmra.mxu0 %v769
      %v881 = vpop.f32.mrf.mxu0
      %v882 = vadd.f32 %v673, %v881
      %883 = vmatmul.f32.gmra.mxu0 %v772
      %v884 = vpop.f32.mrf.mxu0
      %v885 = vadd.f32 %v676, %v884
      %886 = vmatmul.f32.gmra.mxu0 %v775
      %v887 = vpop.f32.mrf.mxu0
      %v888 = vadd.f32 %v679, %v887
      %889 = vmatmul.f32.gmra.mxu0 %v778
      %v890 = vpop.f32.mrf.mxu0
      %v891 = vadd.f32 %v682, %v890
      %892 = vmatmul.f32.gmra.mxu0 %v781
      %v893 = vpop.f32.mrf.mxu0
      %v894 = vadd.f32 %v685, %v893
      %895 = vmatmul.f32.gmra.mxu0 %v784
      %v896 = vpop.f32.mrf.mxu0
      %v897 = vadd.f32 %v688, %v896
      %898 = vmatmul.f32.gmra.mxu0 %v787
      %v899 = vpop.f32.mrf.mxu0
      %v900 = vadd.f32 %v691, %v899
      %901 = vmatmul.f32.gmra.mxu0 %v790
      %v902 = vpop.f32.mrf.mxu0
      %v903 = vadd.f32 %v694, %v902
      %904 = vmatmul.f32.gmra.mxu0 %v793
      %v905 = vpop.f32.mrf.mxu0
      %v906 = vadd.f32 %v697, %v905
      %907 = vmatmul.f32.gmra.mxu0 %v796
      %v908 = vpop.f32.mrf.mxu0
      %v909 = vadd.f32 %v700, %v908
      %910 = vmatmul.f32.gmra.mxu0 %v799
      %v911 = vpop.f32.mrf.mxu0
      %v912 = vadd.f32 %v703, %v911
      %913 = vmatmul.f32.gmra.mxu0 %v802
      %v914 = vpop.f32.mrf.mxu0
      %v915 = vadd.f32 %v706, %v914
      %916 = vmatmul.f32.gmra.mxu0 %v805
      %v917 = vpop.f32.mrf.mxu0
      %v918 = vadd.f32 %v709, %v917
      %919 = vmatmul.f32.gmra.mxu0 %v808
      %v920 = vpop.f32.mrf.mxu0
      %v921 = vadd.f32 %v712, %v920
      %922 = vmatmul.f32.gmra.mxu0 %v811
      %v923 = vpop.f32.mrf.mxu0
      %v924 = vadd.f32 %v715, %v923
      %925 = vmatmul.f32.gmra.mxu0 %v814
      %v926 = vpop.f32.mrf.mxu0
      %v927 = vadd.f32 %v718, %v926
      %928 = vmatmul.f32.gmra.mxu0 %v817
      %v929 = vpop.f32.mrf.mxu0
      %v930 = vadd.f32 %v721, %v929
      %931 = vmatmul.f32.gmra.mxu0 %v820
      %v932 = vpop.f32.mrf.mxu0
      %v933 = vadd.f32 %v724, %v932
      %934 = vmatmul.f32.gmra.mxu0 %v823
      %v935 = vpop.f32.mrf.mxu0
      %v936 = vadd.f32 %v727, %v935
      %937 = vdwg.mxu0
      %s938 = scalar_lea.vmem [#allocation2], 24
      %v939 = vld [vmem:[%s938] sm:$0xff]
      %v940 = vld [vmem:[%s938 + $0x8] sm:$0xff]
      %v941 = vld [vmem:[%s938 + $0x18] sm:$0xff]
      %v942 = vld [vmem:[%s938 + $0x20] sm:$0xff]
      %v943 = vld [vmem:[%s938 + $0x30] sm:$0xff]
      %v944 = vld [vmem:[%s938 + $0x38] sm:$0xff]
      %v945 = vld [vmem:[%s938 + $0x48] sm:$0xff]
      %v946 = vld [vmem:[%s938 + $0x50] sm:$0xff]
      %v947 = vld [vmem:[%s938 + $0x60] sm:$0xff]
      %v948 = vld [vmem:[%s938 + $0x68] sm:$0xff]
      %v949 = vld [vmem:[%s938 + $0x78] sm:$0xff]
      %v950 = vld [vmem:[%s938 + $0x80] sm:$0xff]
      %v951 = vld [vmem:[%s938 + $0x90] sm:$0xff]
      %v952 = vld [vmem:[%s938 + $0x98] sm:$0xff]
      %v953 = vld [vmem:[%s938 + $0xa8] sm:$0xff]
      %v954 = vld [vmem:[%s938 + $0xb0] sm:$0xff]
      %v955 = vld [vmem:[%s938 + $0xc0] sm:$0xff]
      %v956 = vld [vmem:[%s938 + $0xc8] sm:$0xff]
      %v957 = vld [vmem:[%s938 + $0xd8] sm:$0xff]
      %v958 = vld [vmem:[%s938 + $0xe0] sm:$0xff]
      %v959 = vld [vmem:[%s938 + $0xf0] sm:$0xff]
      %v960 = vld [vmem:[%s938 + $0xf8] sm:$0xff]
      %v961 = vld [vmem:[%s938 + $0x108] sm:$0xff]
      %v962 = vld [vmem:[%s938 + $0x110] sm:$0xff]
      %v963 = vld [vmem:[%s938 + $0x120] sm:$0xff]
      %v964 = vld [vmem:[%s938 + $0x128] sm:$0xff]
      %v965 = vld [vmem:[%s938 + $0x138] sm:$0xff]
      %v966 = vld [vmem:[%s938 + $0x140] sm:$0xff]
      %v967 = vld [vmem:[%s938 + $0x150] sm:$0xff]
      %v968 = vld [vmem:[%s938 + $0x158] sm:$0xff]
      %v969 = vld [vmem:[%s938 + $0x168] sm:$0xff]
      %v970 = vld [vmem:[%s938 + $0x170] sm:$0xff]
      %s971 = scalar_lea.vmem %s2, 128
      %v972 = vld [vmem:[%s971] sm:$0xff]
      %v973 = vld [vmem:[%s971 + $0x8] sm:$0xff]
      %v974 = vld [vmem:[%s971 + $0x10] sm:$0xff]
      %v975 = vld [vmem:[%s971 + $0x18] sm:$0xff]
      %v976 = vld [vmem:[%s971 + $0x20] sm:$0xff]
      %v977 = vld [vmem:[%s971 + $0x28] sm:$0xff]
      %v978 = vld [vmem:[%s971 + $0x30] sm:$0xff]
      %v979 = vld [vmem:[%s971 + $0x38] sm:$0xff]
      %v981 = vsel %vm382, %v939, 0
      %v984 = vsel %vm382, %v940, 0
      %v987 = vsel %vm382, %v941, 0
      %v990 = vsel %vm382, %v942, 0
      %v993 = vsel %vm382, %v943, 0
      %v996 = vsel %vm382, %v944, 0
      %v999 = vsel %vm382, %v945, 0
      %v1002 = vsel %vm382, %v946, 0
      %v1005 = vsel %vm382, %v947, 0
      %v1008 = vsel %vm382, %v948, 0
      %v1011 = vsel %vm382, %v949, 0
      %v1014 = vsel %vm382, %v950, 0
      %v1017 = vsel %vm382, %v951, 0
      %v1020 = vsel %vm382, %v952, 0
      %v1023 = vsel %vm382, %v953, 0
      %v1026 = vsel %vm382, %v954, 0
      %v1029 = vsel %vm382, %v955, 0
      %v1032 = vsel %vm382, %v956, 0
      %v1035 = vsel %vm382, %v957, 0
      %v1038 = vsel %vm382, %v958, 0
      %v1041 = vsel %vm382, %v959, 0
      %v1044 = vsel %vm382, %v960, 0
      %v1047 = vsel %vm382, %v961, 0
      %v1050 = vsel %vm382, %v962, 0
      %v1053 = vsel %vm382, %v963, 0
      %v1056 = vsel %vm382, %v964, 0
      %v1059 = vsel %vm382, %v965, 0
      %v1062 = vsel %vm382, %v966, 0
      %v1065 = vsel %vm382, %v967, 0
      %v1068 = vsel %vm382, %v968, 0
      %v1071 = vsel %vm382, %v969, 0
      %v1074 = vsel %vm382, %v970, 0
      %1076 = vmatpush.msra.mxu0 0.0
      %1077 = vmatpush.msra.mxu0 0.0
      %1078 = vmatpush.msra.mxu0 0.0
      %1079 = vmatpush.msra.mxu0 0.0
      %1080 = vmatpush.msra.mxu0 0.0
      %1081 = vmatpush.msra.mxu0 0.0
      %1082 = vmatpush.msra.mxu0 0.0
      %1083 = vmatpush.msra.mxu0 0.0
      %1084 = vmatpush.msra.mxu0 %v979
      %1085 = vmatpush.msra.mxu0 %v978
      %1086 = vmatpush.msra.mxu0 %v977
      %1087 = vmatpush.msra.mxu0 %v976
      %1088 = vmatpush.msra.mxu0 %v975
      %1089 = vmatpush.msra.mxu0 %v974
      %1090 = vmatpush.msra.mxu0 %v973
      %1091 = vmatpush.msra.mxu0 %v972
      %1092 = vmatmul.f32.gmra.mxu0 %v981
      %v1093 = vpop.f32.mrf.mxu0
      %v1094 = vadd.f32 0.0, %v1093
      %1095 = vmatmul.f32.gmra.mxu0 %v984
      %v1096 = vpop.f32.mrf.mxu0
      %v1097 = vadd.f32 0.0, %v1096
      %1098 = vmatmul.f32.gmra.mxu0 %v987
      %v1099 = vpop.f32.mrf.mxu0
      %v1100 = vadd.f32 0.0, %v1099
      %1101 = vmatmul.f32.gmra.mxu0 %v990
      %v1102 = vpop.f32.mrf.mxu0
      %v1103 = vadd.f32 0.0, %v1102
      %1104 = vmatmul.f32.gmra.mxu0 %v993
      %v1105 = vpop.f32.mrf.mxu0
      %v1106 = vadd.f32 0.0, %v1105
      %1107 = vmatmul.f32.gmra.mxu0 %v996
      %v1108 = vpop.f32.mrf.mxu0
      %v1109 = vadd.f32 0.0, %v1108
      %1110 = vmatmul.f32.gmra.mxu0 %v999
      %v1111 = vpop.f32.mrf.mxu0
      %v1112 = vadd.f32 0.0, %v1111
      %1113 = vmatmul.f32.gmra.mxu0 %v1002
      %v1114 = vpop.f32.mrf.mxu0
      %v1115 = vadd.f32 0.0, %v1114
      %1116 = vmatmul.f32.gmra.mxu0 %v1005
      %v1117 = vpop.f32.mrf.mxu0
      %v1118 = vadd.f32 0.0, %v1117
      %1119 = vmatmul.f32.gmra.mxu0 %v1008
      %v1120 = vpop.f32.mrf.mxu0
      %v1121 = vadd.f32 0.0, %v1120
      %1122 = vmatmul.f32.gmra.mxu0 %v1011
      %v1123 = vpop.f32.mrf.mxu0
      %v1124 = vadd.f32 0.0, %v1123
      %1125 = vmatmul.f32.gmra.mxu0 %v1014
      %v1126 = vpop.f32.mrf.mxu0
      %v1127 = vadd.f32 0.0, %v1126
      %1128 = vmatmul.f32.gmra.mxu0 %v1017
      %v1129 = vpop.f32.mrf.mxu0
      %v1130 = vadd.f32 0.0, %v1129
      %1131 = vmatmul.f32.gmra.mxu0 %v1020
      %v1132 = vpop.f32.mrf.mxu0
      %v1133 = vadd.f32 0.0, %v1132
      %1134 = vmatmul.f32.gmra.mxu0 %v1023
      %v1135 = vpop.f32.mrf.mxu0
      %v1136 = vadd.f32 0.0, %v1135
      %1137 = vmatmul.f32.gmra.mxu0 %v1026
      %v1138 = vpop.f32.mrf.mxu0
      %v1139 = vadd.f32 0.0, %v1138
      %1140 = vmatmul.f32.gmra.mxu0 %v1029
      %v1141 = vpop.f32.mrf.mxu0
      %v1142 = vadd.f32 0.0, %v1141
      %1143 = vmatmul.f32.gmra.mxu0 %v1032
      %v1144 = vpop.f32.mrf.mxu0
      %v1145 = vadd.f32 0.0, %v1144
      %1146 = vmatmul.f32.gmra.mxu0 %v1035
      %v1147 = vpop.f32.mrf.mxu0
      %v1148 = vadd.f32 0.0, %v1147
      %1149 = vmatmul.f32.gmra.mxu0 %v1038
      %v1150 = vpop.f32.mrf.mxu0
      %v1151 = vadd.f32 0.0, %v1150
      %1152 = vmatmul.f32.gmra.mxu0 %v1041
      %v1153 = vpop.f32.mrf.mxu0
      %v1154 = vadd.f32 0.0, %v1153
      %1155 = vmatmul.f32.gmra.mxu0 %v1044
      %v1156 = vpop.f32.mrf.mxu0
      %v1157 = vadd.f32 0.0, %v1156
      %1158 = vmatmul.f32.gmra.mxu0 %v1047
      %v1159 = vpop.f32.mrf.mxu0
      %v1160 = vadd.f32 0.0, %v1159
      %1161 = vmatmul.f32.gmra.mxu0 %v1050
      %v1162 = vpop.f32.mrf.mxu0
      %v1163 = vadd.f32 0.0, %v1162
      %1164 = vmatmul.f32.gmra.mxu0 %v1053
      %v1165 = vpop.f32.mrf.mxu0
      %v1166 = vadd.f32 0.0, %v1165
      %1167 = vmatmul.f32.gmra.mxu0 %v1056
      %v1168 = vpop.f32.mrf.mxu0
      %v1169 = vadd.f32 0.0, %v1168
      %1170 = vmatmul.f32.gmra.mxu0 %v1059
      %v1171 = vpop.f32.mrf.mxu0
      %v1172 = vadd.f32 0.0, %v1171
      %1173 = vmatmul.f32.gmra.mxu0 %v1062
      %v1174 = vpop.f32.mrf.mxu0
      %v1175 = vadd.f32 0.0, %v1174
      %1176 = vmatmul.f32.gmra.mxu0 %v1065
      %v1177 = vpop.f32.mrf.mxu0
      %v1178 = vadd.f32 0.0, %v1177
      %1179 = vmatmul.f32.gmra.mxu0 %v1068
      %v1180 = vpop.f32.mrf.mxu0
      %v1181 = vadd.f32 0.0, %v1180
      %1182 = vmatmul.f32.gmra.mxu0 %v1071
      %v1183 = vpop.f32.mrf.mxu0
      %v1184 = vadd.f32 0.0, %v1183
      %1185 = vmatmul.f32.gmra.mxu0 %v1074
      %v1186 = vpop.f32.mrf.mxu0
      %v1187 = vadd.f32 0.0, %v1186
      %1188 = vdwg.mxu0
      %v1189 = vadd.f32 %v843, %v1094
      %v1190 = vadd.f32 %v846, %v1097
      %v1191 = vadd.f32 %v849, %v1100
      %v1192 = vadd.f32 %v852, %v1103
      %v1193 = vadd.f32 %v855, %v1106
      %v1194 = vadd.f32 %v858, %v1109
      %v1195 = vadd.f32 %v861, %v1112
      %v1196 = vadd.f32 %v864, %v1115
      %v1197 = vadd.f32 %v867, %v1118
      %v1198 = vadd.f32 %v870, %v1121
      %v1199 = vadd.f32 %v873, %v1124
      %v1200 = vadd.f32 %v876, %v1127
      %v1201 = vadd.f32 %v879, %v1130
      %v1202 = vadd.f32 %v882, %v1133
      %v1203 = vadd.f32 %v885, %v1136
      %v1204 = vadd.f32 %v888, %v1139
      %v1205 = vadd.f32 %v891, %v1142
      %v1206 = vadd.f32 %v894, %v1145
      %v1207 = vadd.f32 %v897, %v1148
      %v1208 = vadd.f32 %v900, %v1151
      %v1209 = vadd.f32 %v903, %v1154
      %v1210 = vadd.f32 %v906, %v1157
      %v1211 = vadd.f32 %v909, %v1160
      %v1212 = vadd.f32 %v912, %v1163
      %v1213 = vadd.f32 %v915, %v1166
      %v1214 = vadd.f32 %v918, %v1169
      %v1215 = vadd.f32 %v921, %v1172
      %v1216 = vadd.f32 %v924, %v1175
      %v1217 = vadd.f32 %v927, %v1178
      %v1218 = vadd.f32 %v930, %v1181
      %v1219 = vadd.f32 %v933, %v1184
      %v1220 = vadd.f32 %v936, %v1187
      %v1221 = vld [vmem:[%s938 + $0x1] sm:$0xff]
      %v1222 = vld [vmem:[%s938 + $0x9] sm:$0xff]
      %v1223 = vld [vmem:[%s938 + $0x19] sm:$0xff]
      %v1224 = vld [vmem:[%s938 + $0x21] sm:$0xff]
      %v1225 = vld [vmem:[%s938 + $0x31] sm:$0xff]
      %v1226 = vld [vmem:[%s938 + $0x39] sm:$0xff]
      %v1227 = vld [vmem:[%s938 + $0x49] sm:$0xff]
      %v1228 = vld [vmem:[%s938 + $0x51] sm:$0xff]
      %v1229 = vld [vmem:[%s938 + $0x61] sm:$0xff]
      %v1230 = vld [vmem:[%s938 + $0x69] sm:$0xff]
      %v1231 = vld [vmem:[%s938 + $0x79] sm:$0xff]
      %v1232 = vld [vmem:[%s938 + $0x81] sm:$0xff]
      %v1233 = vld [vmem:[%s938 + $0x91] sm:$0xff]
      %v1234 = vld [vmem:[%s938 + $0x99] sm:$0xff]
      %v1235 = vld [vmem:[%s938 + $0xa9] sm:$0xff]
      %v1236 = vld [vmem:[%s938 + $0xb1] sm:$0xff]
      %v1237 = vld [vmem:[%s938 + $0xc1] sm:$0xff]
      %v1238 = vld [vmem:[%s938 + $0xc9] sm:$0xff]
      %v1239 = vld [vmem:[%s938 + $0xd9] sm:$0xff]
      %v1240 = vld [vmem:[%s938 + $0xe1] sm:$0xff]
      %v1241 = vld [vmem:[%s938 + $0xf1] sm:$0xff]
      %v1242 = vld [vmem:[%s938 + $0xf9] sm:$0xff]
      %v1243 = vld [vmem:[%s938 + $0x109] sm:$0xff]
      %v1244 = vld [vmem:[%s938 + $0x111] sm:$0xff]
      %v1245 = vld [vmem:[%s938 + $0x121] sm:$0xff]
      %v1246 = vld [vmem:[%s938 + $0x129] sm:$0xff]
      %v1247 = vld [vmem:[%s938 + $0x139] sm:$0xff]
      %v1248 = vld [vmem:[%s938 + $0x141] sm:$0xff]
      %v1249 = vld [vmem:[%s938 + $0x151] sm:$0xff]
      %v1250 = vld [vmem:[%s938 + $0x159] sm:$0xff]
      %v1251 = vld [vmem:[%s938 + $0x169] sm:$0xff]
      %v1252 = vld [vmem:[%s938 + $0x171] sm:$0xff]
      %s1253 = scalar_lea.vmem %s2, 192
      %v1254 = vld [vmem:[%s1253] sm:$0xff]
      %v1255 = vld [vmem:[%s1253 + $0x8] sm:$0xff]
      %v1256 = vld [vmem:[%s1253 + $0x10] sm:$0xff]
      %v1257 = vld [vmem:[%s1253 + $0x18] sm:$0xff]
      %v1258 = vld [vmem:[%s1253 + $0x20] sm:$0xff]
      %v1259 = vld [vmem:[%s1253 + $0x28] sm:$0xff]
      %v1260 = vld [vmem:[%s1253 + $0x30] sm:$0xff]
      %v1261 = vld [vmem:[%s1253 + $0x38] sm:$0xff]
      %v1263 = vsel %vm382, %v1221, 0
      %v1266 = vsel %vm382, %v1222, 0
      %v1269 = vsel %vm382, %v1223, 0
      %v1272 = vsel %vm382, %v1224, 0
      %v1275 = vsel %vm382, %v1225, 0
      %v1278 = vsel %vm382, %v1226, 0
      %v1281 = vsel %vm382, %v1227, 0
      %v1284 = vsel %vm382, %v1228, 0
      %v1287 = vsel %vm382, %v1229, 0
      %v1290 = vsel %vm382, %v1230, 0
      %v1293 = vsel %vm382, %v1231, 0
      %v1296 = vsel %vm382, %v1232, 0
      %v1299 = vsel %vm382, %v1233, 0
      %v1302 = vsel %vm382, %v1234, 0
      %v1305 = vsel %vm382, %v1235, 0
      %v1308 = vsel %vm382, %v1236, 0
      %v1311 = vsel %vm382, %v1237, 0
      %v1314 = vsel %vm382, %v1238, 0
      %v1317 = vsel %vm382, %v1239, 0
      %v1320 = vsel %vm382, %v1240, 0
      %v1323 = vsel %vm382, %v1241, 0
      %v1326 = vsel %vm382, %v1242, 0
      %v1329 = vsel %vm382, %v1243, 0
      %v1332 = vsel %vm382, %v1244, 0
      %v1335 = vsel %vm382, %v1245, 0
      %v1338 = vsel %vm382, %v1246, 0
      %v1341 = vsel %vm382, %v1247, 0
      %v1344 = vsel %vm382, %v1248, 0
      %v1347 = vsel %vm382, %v1249, 0
      %v1350 = vsel %vm382, %v1250, 0
      %v1353 = vsel %vm382, %v1251, 0
      %v1356 = vsel %vm382, %v1252, 0
      %1358 = vmatpush.msra.mxu0 0.0
      %1359 = vmatpush.msra.mxu0 0.0
      %1360 = vmatpush.msra.mxu0 0.0
      %1361 = vmatpush.msra.mxu0 0.0
      %1362 = vmatpush.msra.mxu0 0.0
      %1363 = vmatpush.msra.mxu0 0.0
      %1364 = vmatpush.msra.mxu0 0.0
      %1365 = vmatpush.msra.mxu0 0.0
      %1366 = vmatpush.msra.mxu0 %v1261
      %1367 = vmatpush.msra.mxu0 %v1260
      %1368 = vmatpush.msra.mxu0 %v1259
      %1369 = vmatpush.msra.mxu0 %v1258
      %1370 = vmatpush.msra.mxu0 %v1257
      %1371 = vmatpush.msra.mxu0 %v1256
      %1372 = vmatpush.msra.mxu0 %v1255
      %1373 = vmatpush.msra.mxu0 %v1254
      %1374 = vmatmul.f32.gmra.mxu0 %v1263
      %v1375 = vpop.f32.mrf.mxu0
      %v1376 = vadd.f32 0.0, %v1375
      %1377 = vmatmul.f32.gmra.mxu0 %v1266
      %v1378 = vpop.f32.mrf.mxu0
      %v1379 = vadd.f32 0.0, %v1378
      %1380 = vmatmul.f32.gmra.mxu0 %v1269
      %v1381 = vpop.f32.mrf.mxu0
      %v1382 = vadd.f32 0.0, %v1381
      %1383 = vmatmul.f32.gmra.mxu0 %v1272
      %v1384 = vpop.f32.mrf.mxu0
      %v1385 = vadd.f32 0.0, %v1384
      %1386 = vmatmul.f32.gmra.mxu0 %v1275
      %v1387 = vpop.f32.mrf.mxu0
      %v1388 = vadd.f32 0.0, %v1387
      %1389 = vmatmul.f32.gmra.mxu0 %v1278
      %v1390 = vpop.f32.mrf.mxu0
      %v1391 = vadd.f32 0.0, %v1390
      %1392 = vmatmul.f32.gmra.mxu0 %v1281
      %v1393 = vpop.f32.mrf.mxu0
      %v1394 = vadd.f32 0.0, %v1393
      %1395 = vmatmul.f32.gmra.mxu0 %v1284
      %v1396 = vpop.f32.mrf.mxu0
      %v1397 = vadd.f32 0.0, %v1396
      %1398 = vmatmul.f32.gmra.mxu0 %v1287
      %v1399 = vpop.f32.mrf.mxu0
      %v1400 = vadd.f32 0.0, %v1399
      %1401 = vmatmul.f32.gmra.mxu0 %v1290
      %v1402 = vpop.f32.mrf.mxu0
      %v1403 = vadd.f32 0.0, %v1402
      %1404 = vmatmul.f32.gmra.mxu0 %v1293
      %v1405 = vpop.f32.mrf.mxu0
      %v1406 = vadd.f32 0.0, %v1405
      %1407 = vmatmul.f32.gmra.mxu0 %v1296
      %v1408 = vpop.f32.mrf.mxu0
      %v1409 = vadd.f32 0.0, %v1408
      %1410 = vmatmul.f32.gmra.mxu0 %v1299
      %v1411 = vpop.f32.mrf.mxu0
      %v1412 = vadd.f32 0.0, %v1411
      %1413 = vmatmul.f32.gmra.mxu0 %v1302
      %v1414 = vpop.f32.mrf.mxu0
      %v1415 = vadd.f32 0.0, %v1414
      %1416 = vmatmul.f32.gmra.mxu0 %v1305
      %v1417 = vpop.f32.mrf.mxu0
      %v1418 = vadd.f32 0.0, %v1417
      %1419 = vmatmul.f32.gmra.mxu0 %v1308
      %v1420 = vpop.f32.mrf.mxu0
      %v1421 = vadd.f32 0.0, %v1420
      %1422 = vmatmul.f32.gmra.mxu0 %v1311
      %v1423 = vpop.f32.mrf.mxu0
      %v1424 = vadd.f32 0.0, %v1423
      %1425 = vmatmul.f32.gmra.mxu0 %v1314
      %v1426 = vpop.f32.mrf.mxu0
      %v1427 = vadd.f32 0.0, %v1426
      %1428 = vmatmul.f32.gmra.mxu0 %v1317
      %v1429 = vpop.f32.mrf.mxu0
      %v1430 = vadd.f32 0.0, %v1429
      %1431 = vmatmul.f32.gmra.mxu0 %v1320
      %v1432 = vpop.f32.mrf.mxu0
      %v1433 = vadd.f32 0.0, %v1432
      %1434 = vmatmul.f32.gmra.mxu0 %v1323
      %v1435 = vpop.f32.mrf.mxu0
      %v1436 = vadd.f32 0.0, %v1435
      %1437 = vmatmul.f32.gmra.mxu0 %v1326
      %v1438 = vpop.f32.mrf.mxu0
      %v1439 = vadd.f32 0.0, %v1438
      %1440 = vmatmul.f32.gmra.mxu0 %v1329
      %v1441 = vpop.f32.mrf.mxu0
      %v1442 = vadd.f32 0.0, %v1441
      %1443 = vmatmul.f32.gmra.mxu0 %v1332
      %v1444 = vpop.f32.mrf.mxu0
      %v1445 = vadd.f32 0.0, %v1444
      %1446 = vmatmul.f32.gmra.mxu0 %v1335
      %v1447 = vpop.f32.mrf.mxu0
      %v1448 = vadd.f32 0.0, %v1447
      %1449 = vmatmul.f32.gmra.mxu0 %v1338
      %v1450 = vpop.f32.mrf.mxu0
      %v1451 = vadd.f32 0.0, %v1450
      %1452 = vmatmul.f32.gmra.mxu0 %v1341
      %v1453 = vpop.f32.mrf.mxu0
      %v1454 = vadd.f32 0.0, %v1453
      %1455 = vmatmul.f32.gmra.mxu0 %v1344
      %v1456 = vpop.f32.mrf.mxu0
      %v1457 = vadd.f32 0.0, %v1456
      %1458 = vmatmul.f32.gmra.mxu0 %v1347
      %v1459 = vpop.f32.mrf.mxu0
      %v1460 = vadd.f32 0.0, %v1459
      %1461 = vmatmul.f32.gmra.mxu0 %v1350
      %v1462 = vpop.f32.mrf.mxu0
      %v1463 = vadd.f32 0.0, %v1462
      %1464 = vmatmul.f32.gmra.mxu0 %v1353
      %v1465 = vpop.f32.mrf.mxu0
      %v1466 = vadd.f32 0.0, %v1465
      %1467 = vmatmul.f32.gmra.mxu0 %v1356
      %v1468 = vpop.f32.mrf.mxu0
      %v1469 = vadd.f32 0.0, %v1468
      %1470 = vdwg.mxu0
      %v1471 = vadd.f32 %v1189, %v1376
      %v1472 = vadd.f32 %v1190, %v1379
      %v1473 = vadd.f32 %v1191, %v1382
      %v1474 = vadd.f32 %v1192, %v1385
      %v1475 = vadd.f32 %v1193, %v1388
      %v1476 = vadd.f32 %v1194, %v1391
      %v1477 = vadd.f32 %v1195, %v1394
      %v1478 = vadd.f32 %v1196, %v1397
      %v1479 = vadd.f32 %v1197, %v1400
      %v1480 = vadd.f32 %v1198, %v1403
      %v1481 = vadd.f32 %v1199, %v1406
      %v1482 = vadd.f32 %v1200, %v1409
      %v1483 = vadd.f32 %v1201, %v1412
      %v1484 = vadd.f32 %v1202, %v1415
      %v1485 = vadd.f32 %v1203, %v1418
      %v1486 = vadd.f32 %v1204, %v1421
      %v1487 = vadd.f32 %v1205, %v1424
      %v1488 = vadd.f32 %v1206, %v1427
      %v1489 = vadd.f32 %v1207, %v1430
      %v1490 = vadd.f32 %v1208, %v1433
      %v1491 = vadd.f32 %v1209, %v1436
      %v1492 = vadd.f32 %v1210, %v1439
      %v1493 = vadd.f32 %v1211, %v1442
      %v1494 = vadd.f32 %v1212, %v1445
      %v1495 = vadd.f32 %v1213, %v1448
      %v1496 = vadd.f32 %v1214, %v1451
      %v1497 = vadd.f32 %v1215, %v1454
      %v1498 = vadd.f32 %v1216, %v1457
      %v1499 = vadd.f32 %v1217, %v1460
      %v1500 = vadd.f32 %v1218, %v1463
      %v1501 = vadd.f32 %v1219, %v1466
      %v1502 = vadd.f32 %v1220, %v1469
      %vm1503 = vcmask 261120
      %1504 = vst.msk [vmem:[%s325] sm:$0xff] %vm1503, %v1471
      %1505 = vst.msk [vmem:[%s325 + $0x8] sm:$0xff] %vm1503, %v1472
      %1506 = vst.msk [vmem:[%s325 + $0x10] sm:$0xff] %vm1503, %v1473
      %1507 = vst.msk [vmem:[%s325 + $0x18] sm:$0xff] %vm1503, %v1474
      %1508 = vst.msk [vmem:[%s325 + $0x20] sm:$0xff] %vm1503, %v1475
      %1509 = vst.msk [vmem:[%s325 + $0x28] sm:$0xff] %vm1503, %v1476
      %1510 = vst.msk [vmem:[%s325 + $0x30] sm:$0xff] %vm1503, %v1477
      %1511 = vst.msk [vmem:[%s325 + $0x38] sm:$0xff] %vm1503, %v1478
      %1512 = vst.msk [vmem:[%s325 + $0x40] sm:$0xff] %vm1503, %v1479
      %1513 = vst.msk [vmem:[%s325 + $0x48] sm:$0xff] %vm1503, %v1480
      %1514 = vst.msk [vmem:[%s325 + $0x50] sm:$0xff] %vm1503, %v1481
      %1515 = vst.msk [vmem:[%s325 + $0x58] sm:$0xff] %vm1503, %v1482
      %1516 = vst.msk [vmem:[%s325 + $0x60] sm:$0xff] %vm1503, %v1483
      %1517 = vst.msk [vmem:[%s325 + $0x68] sm:$0xff] %vm1503, %v1484
      %1518 = vst.msk [vmem:[%s325 + $0x70] sm:$0xff] %vm1503, %v1485
      %1519 = vst.msk [vmem:[%s325 + $0x78] sm:$0xff] %vm1503, %v1486
      %1520 = vst.msk [vmem:[%s325 + $0x80] sm:$0xff] %vm1503, %v1487
      %1521 = vst.msk [vmem:[%s325 + $0x88] sm:$0xff] %vm1503, %v1488
      %1522 = vst.msk [vmem:[%s325 + $0x90] sm:$0xff] %vm1503, %v1489
      %1523 = vst.msk [vmem:[%s325 + $0x98] sm:$0xff] %vm1503, %v1490
      %1524 = vst.msk [vmem:[%s325 + $0xa0] sm:$0xff] %vm1503, %v1491
      %1525 = vst.msk [vmem:[%s325 + $0xa8] sm:$0xff] %vm1503, %v1492
      %1526 = vst.msk [vmem:[%s325 + $0xb0] sm:$0xff] %vm1503, %v1493
      %1527 = vst.msk [vmem:[%s325 + $0xb8] sm:$0xff] %vm1503, %v1494
      %1528 = vst.msk [vmem:[%s325 + $0xc0] sm:$0xff] %vm1503, %v1495
      %1529 = vst.msk [vmem:[%s325 + $0xc8] sm:$0xff] %vm1503, %v1496
      %1530 = vst.msk [vmem:[%s325 + $0xd0] sm:$0xff] %vm1503, %v1497
      %1531 = vst.msk [vmem:[%s325 + $0xd8] sm:$0xff] %vm1503, %v1498
      %1532 = vst.msk [vmem:[%s325 + $0xe0] sm:$0xff] %vm1503, %v1499
      %1533 = vst.msk [vmem:[%s325 + $0xe8] sm:$0xff] %vm1503, %v1500
      %1534 = vst.msk [vmem:[%s325 + $0xf0] sm:$0xff] %vm1503, %v1501
      %1535 = vst.msk [vmem:[%s325 + $0xf8] sm:$0xff] %vm1503, %v1502
      %v1536 = vsel %vm1503, %v1471, 0.0
      %v1537 = vsel %vm1503, %v1472, 0.0
      %v1538 = vadd.f32 %v1536, %v1537
      %v1539 = vsel %vm1503, %v1473, 0.0
      %v1540 = vadd.f32 %v1538, %v1539
      %v1541 = vsel %vm1503, %v1474, 0.0
      %v1542 = vadd.f32 %v1540, %v1541
      %v1543 = vsel %vm1503, %v1475, 0.0
      %v1544 = vadd.f32 %v1542, %v1543
      %v1545 = vsel %vm1503, %v1476, 0.0
      %v1546 = vadd.f32 %v1544, %v1545
      %v1547 = vsel %vm1503, %v1477, 0.0
      %v1548 = vadd.f32 %v1546, %v1547
      %v1549 = vsel %vm1503, %v1478, 0.0
      %v1550 = vadd.f32 %v1548, %v1549
      %v1551 = vsel %vm1503, %v1479, 0.0
      %v1552 = vadd.f32 %v1550, %v1551
      %v1553 = vsel %vm1503, %v1480, 0.0
      %v1554 = vadd.f32 %v1552, %v1553
      %v1555 = vsel %vm1503, %v1481, 0.0
      %v1556 = vadd.f32 %v1554, %v1555
      %v1557 = vsel %vm1503, %v1482, 0.0
      %v1558 = vadd.f32 %v1556, %v1557
      %v1559 = vsel %vm1503, %v1483, 0.0
      %v1560 = vadd.f32 %v1558, %v1559
      %v1561 = vsel %vm1503, %v1484, 0.0
      %v1562 = vadd.f32 %v1560, %v1561
      %v1563 = vsel %vm1503, %v1485, 0.0
      %v1564 = vadd.f32 %v1562, %v1563
      %v1565 = vsel %vm1503, %v1486, 0.0
      %v1566 = vadd.f32 %v1564, %v1565
      %v1567 = vsel %vm1503, %v1487, 0.0
      %v1568 = vadd.f32 %v1566, %v1567
      %v1569 = vsel %vm1503, %v1488, 0.0
      %v1570 = vadd.f32 %v1568, %v1569
      %v1571 = vsel %vm1503, %v1489, 0.0
      %v1572 = vadd.f32 %v1570, %v1571
      %v1573 = vsel %vm1503, %v1490, 0.0
      %v1574 = vadd.f32 %v1572, %v1573
      %v1575 = vsel %vm1503, %v1491, 0.0
      %v1576 = vadd.f32 %v1574, %v1575
      %v1577 = vsel %vm1503, %v1492, 0.0
      %v1578 = vadd.f32 %v1576, %v1577
      %v1579 = vsel %vm1503, %v1493, 0.0
      %v1580 = vadd.f32 %v1578, %v1579
      %v1581 = vsel %vm1503, %v1494, 0.0
      %v1582 = vadd.f32 %v1580, %v1581
      %v1583 = vsel %vm1503, %v1495, 0.0
      %v1584 = vadd.f32 %v1582, %v1583
      %v1585 = vsel %vm1503, %v1496, 0.0
      %v1586 = vadd.f32 %v1584, %v1585
      %v1587 = vsel %vm1503, %v1497, 0.0
      %v1588 = vadd.f32 %v1586, %v1587
      %v1589 = vsel %vm1503, %v1498, 0.0
      %v1590 = vadd.f32 %v1588, %v1589
      %v1591 = vsel %vm1503, %v1499, 0.0
      %v1592 = vadd.f32 %v1590, %v1591
      %v1593 = vsel %vm1503, %v1500, 0.0
      %v1594 = vadd.f32 %v1592, %v1593
      %v1595 = vsel %vm1503, %v1501, 0.0
      %v1596 = vadd.f32 %v1594, %v1595
      %v1597 = vsel %vm1503, %v1502, 0.0
      %v1598 = vadd.f32 %v1596, %v1597
      %v1599 = vrot.slane %v1598, 4
      %v1600 = vadd.f32 %v1598, %v1599
      %v1601 = vrot.slane %v1600, 2
      %v1602 = vadd.f32 %v1600, %v1601
      %v1603 = vrot.slane %v1602, 1
      %v1604 = vadd.f32 %v1602, %v1603
      %vm1605 = vcmask 253952
      %1606 = vst.msk [vmem:[%s333] sm:$0x1] %vm1605, %v1604
      %v1607 = vmul.f32 %v1471, %v1471
      %v1608 = vmul.f32 %v1472, %v1472
      %v1609 = vmul.f32 %v1473, %v1473
      %v1610 = vmul.f32 %v1474, %v1474
      %v1611 = vmul.f32 %v1475, %v1475
      %v1612 = vmul.f32 %v1476, %v1476
      %v1613 = vmul.f32 %v1477, %v1477
      %v1614 = vmul.f32 %v1478, %v1478
      %v1615 = vmul.f32 %v1479, %v1479
      %v1616 = vmul.f32 %v1480, %v1480
      %v1617 = vmul.f32 %v1481, %v1481
      %v1618 = vmul.f32 %v1482, %v1482
      %v1619 = vmul.f32 %v1483, %v1483
      %v1620 = vmul.f32 %v1484, %v1484
      %v1621 = vmul.f32 %v1485, %v1485
      %v1622 = vmul.f32 %v1486, %v1486
      %v1623 = vmul.f32 %v1487, %v1487
      %v1624 = vmul.f32 %v1488, %v1488
      %v1625 = vmul.f32 %v1489, %v1489
      %v1626 = vmul.f32 %v1490, %v1490
      %v1627 = vmul.f32 %v1491, %v1491
      %v1628 = vmul.f32 %v1492, %v1492
      %v1629 = vmul.f32 %v1493, %v1493
      %v1630 = vmul.f32 %v1494, %v1494
      %v1631 = vmul.f32 %v1495, %v1495
      %v1632 = vmul.f32 %v1496, %v1496
      %v1633 = vmul.f32 %v1497, %v1497
      %v1634 = vmul.f32 %v1498, %v1498
      %v1635 = vmul.f32 %v1499, %v1499
      %v1636 = vmul.f32 %v1500, %v1500
      %v1637 = vmul.f32 %v1501, %v1501
      %v1638 = vmul.f32 %v1502, %v1502
      %v1639 = vsel %vm1503, %v1607, 0.0
      %v1640 = vsel %vm1503, %v1608, 0.0
      %v1641 = vadd.f32 %v1639, %v1640
      %v1642 = vsel %vm1503, %v1609, 0.0
      %v1643 = vadd.f32 %v1641, %v1642
      %v1644 = vsel %vm1503, %v1610, 0.0
      %v1645 = vadd.f32 %v1643, %v1644
      %v1646 = vsel %vm1503, %v1611, 0.0
      %v1647 = vadd.f32 %v1645, %v1646
      %v1648 = vsel %vm1503, %v1612, 0.0
      %v1649 = vadd.f32 %v1647, %v1648
      %v1650 = vsel %vm1503, %v1613, 0.0
      %v1651 = vadd.f32 %v1649, %v1650
      %v1652 = vsel %vm1503, %v1614, 0.0
      %v1653 = vadd.f32 %v1651, %v1652
      %v1654 = vsel %vm1503, %v1615, 0.0
      %v1655 = vadd.f32 %v1653, %v1654
      %v1656 = vsel %vm1503, %v1616, 0.0
      %v1657 = vadd.f32 %v1655, %v1656
      %v1658 = vsel %vm1503, %v1617, 0.0
      %v1659 = vadd.f32 %v1657, %v1658
      %v1660 = vsel %vm1503, %v1618, 0.0
      %v1661 = vadd.f32 %v1659, %v1660
      %v1662 = vsel %vm1503, %v1619, 0.0
      %v1663 = vadd.f32 %v1661, %v1662
      %v1664 = vsel %vm1503, %v1620, 0.0
      %v1665 = vadd.f32 %v1663, %v1664
      %v1666 = vsel %vm1503, %v1621, 0.0
      %v1667 = vadd.f32 %v1665, %v1666
      %v1668 = vsel %vm1503, %v1622, 0.0
      %v1669 = vadd.f32 %v1667, %v1668
      %v1670 = vsel %vm1503, %v1623, 0.0
      %v1671 = vadd.f32 %v1669, %v1670
      %v1672 = vsel %vm1503, %v1624, 0.0
      %v1673 = vadd.f32 %v1671, %v1672
      %v1674 = vsel %vm1503, %v1625, 0.0
      %v1675 = vadd.f32 %v1673, %v1674
      %v1676 = vsel %vm1503, %v1626, 0.0
      %v1677 = vadd.f32 %v1675, %v1676
      %v1678 = vsel %vm1503, %v1627, 0.0
      %v1679 = vadd.f32 %v1677, %v1678
      %v1680 = vsel %vm1503, %v1628, 0.0
      %v1681 = vadd.f32 %v1679, %v1680
      %v1682 = vsel %vm1503, %v1629, 0.0
      %v1683 = vadd.f32 %v1681, %v1682
      %v1684 = vsel %vm1503, %v1630, 0.0
      %v1685 = vadd.f32 %v1683, %v1684
      %v1686 = vsel %vm1503, %v1631, 0.0
      %v1687 = vadd.f32 %v1685, %v1686
      %v1688 = vsel %vm1503, %v1632, 0.0
      %v1689 = vadd.f32 %v1687, %v1688
      %v1690 = vsel %vm1503, %v1633, 0.0
      %v1691 = vadd.f32 %v1689, %v1690
      %v1692 = vsel %vm1503, %v1634, 0.0
      %v1693 = vadd.f32 %v1691, %v1692
      %v1694 = vsel %vm1503, %v1635, 0.0
      %v1695 = vadd.f32 %v1693, %v1694
      %v1696 = vsel %vm1503, %v1636, 0.0
      %v1697 = vadd.f32 %v1695, %v1696
      %v1698 = vsel %vm1503, %v1637, 0.0
      %v1699 = vadd.f32 %v1697, %v1698
      %v1700 = vsel %vm1503, %v1638, 0.0
      %v1701 = vadd.f32 %v1699, %v1700
      %v1702 = vrot.slane %v1701, 4
      %v1703 = vadd.f32 %v1701, %v1702
      %v1704 = vrot.slane %v1703, 2
      %v1705 = vadd.f32 %v1703, %v1704
      %v1706 = vrot.slane %v1705, 1
      %v1707 = vadd.f32 %v1705, %v1706
      %1708 = vst.msk [vmem:[%s333 + $0x1] sm:$0x1] %vm1605, %v1707
      %s1709 = smul.u32 16, %s21
      %p1710 = scmp.lt.s32.totalorder %s20, 1
      %s1711 = scalar_select %p1710, %s20, 1
      %p1712 = scmp.lt.s32.totalorder %s1709, 15
      %s1713 = scalar_select %p1712, %s1709, 15
      %s1714 = smul.addr %s1713, 2
      %s1715 = smul.addr %s1711, 32
      %s1716 = sadd.s32 %s1714, %s1715
      %s1717 = smul.addr %s1716, 8
      %s1718 = scalar_lea.vmem %s3, %s1717
      %p1719 = scmp.lt.s32.totalorder %s20, 1
      %s1720 = scalar_select %p1719, %s20, 1
      %p1721 = scmp.lt.s32.totalorder %s21, 0
      %s1722 = scalar_select %p1721, %s21, 0
      %s1723 = sadd.s32 %s1722, %s1720
      %s1724 = smul.addr %s1723, 2
      %s1725 = scalar_lea.vmem %s4, %s1724
      // Predicated region
      $region33: #{downblock_forward.2} parent=31 // pred_check
        %p1726 = pneg %p129
      $region34: #{downblock_forward.2} parent=31 // pred_check_branch
        %1728 = sbr.rel (%p1726) target = $region36
      $region35: #{downblock_forward.2} parent=31 // pred_region
        %s1729 = smul.u32 16, %s21
      $region36: #{downblock_forward.2} parent=31 // pred_fallthru
        _
      // Predicated region
      $region37: #{downblock_forward.2} parent=31 // pred_check
        %p1730 = pneg %p157
      $region38: #{downblock_forward.2} parent=31 // pred_check_branch
        %1732 = sbr.rel (%p1730) target = $region40
      $region39: #{downblock_forward.2} parent=31 // pred_region
        _
      $region40: #{downblock_forward.2} parent=31 // pred_fallthru
        _
    $region32: #{downblock_forward.2} parent=5 // pred_fallthru
      _
    %p1733 = scmp.le.s32.totalorder 2, %s11
    // Predicated region
    $region41: #{downblock_forward.2} parent=5 // pred_check
      %p1734 = pneg %p1733
    $region42: #{downblock_forward.2} parent=5 // pred_check_branch
      %1736 = sbr.rel (%p1734) target = $region44
    $region43: #{downblock_forward.2} parent=5 // pred_region
      %s1737 = ssub.s32 %s11, 2
      // Predicated region
      $region45: #{downblock_forward.2} parent=43 // pred_check
        %p1738 = pneg %p135
      $region46: #{downblock_forward.2} parent=43 // pred_check_branch
        %1740 = sbr.rel (%p1738) target = $region48
      $region47: #{downblock_forward.2} parent=43 // pred_region
        %s1741 = smul.u32 16, %s23
        %p1742 = scmp.lt.s32.totalorder %s22, 1
        %s1743 = scalar_select %p1742, %s22, 1
        %p1744 = scmp.lt.s32.totalorder %s1741, 15
        %s1745 = scalar_select %p1744, %s1741, 15
        %s1746 = smul.addr %s1745, 2
        %s1747 = smul.addr %s1743, 32
        %s1748 = sadd.s32 %s1746, %s1747
        %s1749 = smul.addr %s1748, 8
        %s1750 = scalar_lea.vmem %s3, %s1749
      $region48: #{downblock_forward.2} parent=43 // pred_fallthru
        _
      // Predicated region
      $region49: #{downblock_forward.2} parent=43 // pred_check
        %p1751 = pneg %p163
      $region50: #{downblock_forward.2} parent=43 // pred_check_branch
        %1753 = sbr.rel (%p1751) target = $region52
      $region51: #{downblock_forward.2} parent=43 // pred_region
        %p1754 = scmp.lt.s32.totalorder %s22, 1
        %s1755 = scalar_select %p1754, %s22, 1
        %p1756 = scmp.lt.s32.totalorder %s23, 0
        %s1757 = scalar_select %p1756, %s23, 0
        %s1758 = sadd.s32 %s1757, %s1755
        %s1759 = smul.addr %s1758, 2
        %s1760 = scalar_lea.vmem %s4, %s1759
      $region52: #{downblock_forward.2} parent=43 // pred_fallthru
        _
    $region44: #{downblock_forward.2} parent=5 // pred_fallthru
      _
  $region6: #{downblock_forward.2} parent=0 // loop_footer
    %s15 = sadd.s32 1, %s11
  $region7: #{downblock_forward.2} parent=0 // loop_footer_branch
    %10 = sbr.rel target = $region3
  $region8: #{downblock_forward.2} parent=0 // loop_exit
    _

</llo_original>
